<compile_context>
chip_gen: v6e
topology: v6e:2x2x1
jax: 0.10.0
libtpu: 0.0.40
codegen_flags: <defaults>
</compile_context>

<pallas_src>
import functools

import numpy as np
import jax
import jax.numpy as jnp
from jax.experimental import pallas as pl
from jax.experimental.pallas import tpu as pltpu

N_QUBITS = 3
N_FUZZY_MEM = 2
DEFUZZ_QUBITS = N_QUBITS
DEFUZZ_LAYER = 2
N_RULES = N_FUZZY_MEM ** N_QUBITS     # 8
N_IN = 10
N_OUT = 10

_P_CLAMP = 0.99999 * 0.99999          # effective upper clamp on the RY probability
_MAX_TB = 4096                        # lane-tile cap (~1.5 MiB double-buffered VMEM)


# ---------------------------------------------------------------------------
# Fixed part of the defuzz circuit -> 8x8 unitary (numpy parameter setup glue)
# ---------------------------------------------------------------------------
def _rx(t):
    c, s = np.cos(t / 2.0), np.sin(t / 2.0)
    return np.array([[c, -1j * s], [-1j * s, c]], dtype=np.complex128)


def _rz(t):
    return np.array([[np.exp(-1j * t / 2.0), 0.0],
                     [0.0, np.exp(1j * t / 2.0)]], dtype=np.complex128)


def _one_qubit(gate, q, n=DEFUZZ_QUBITS):
    mats = [np.eye(2, dtype=np.complex128)] * n
    mats[q] = gate
    full = mats[n - 1]
    for j in range(n - 2, -1, -1):      # qiskit little-endian: qubit 0 = LSB
        full = np.kron(full, mats[j])
    return full


def _cx(c, t, n=DEFUZZ_QUBITS):
    dim = 2 ** n
    M = np.zeros((dim, dim), dtype=np.complex128)
    for k in range(dim):
        k2 = k ^ (1 << t) if (k >> c) & 1 else k
        M[k2, k] = 1.0
    return M


def build_defuzz_unitary(weights):
    """Everything in the defuzz circuit after the input RY layer."""
    w = np.asarray(weights, dtype=np.float64)
    U = np.eye(2 ** DEFUZZ_QUBITS, dtype=np.complex128)
    widx = 0
    for _ in range(DEFUZZ_LAYER):
        for j in range(DEFUZZ_QUBITS - 1):
            U = _cx(j, j + 1) @ U
        U = _cx(DEFUZZ_QUBITS - 1, 0) @ U
        for j in range(DEFUZZ_QUBITS):
            U = _one_qubit(_rx(w[widx]), j) @ U
            U = _one_qubit(_rz(w[widx + 1]), j) @ U
            U = _one_qubit(_rx(w[widx + 2]), j) @ U
            widx += 3
    return U


# ---------------------------------------------------------------------------
# Stage 1 kernel: Linear(10,3) + GroupNorm + fuzzy memberships + t-norm circuit
# Everything is (feature, batch): batch sits on lanes.
#
# slab1 (8, 19) layout (rows = rule index where relevant, else feature index):
#   rows 0:3, cols 0:10 = W1        col 10 = b1
#   rows 0:3, col 11 = gn_gamma     col 12 = gn_beta
#   rows 0:3, col 13 = m0  col 14 = m1  col 15 = -1/(2*theta0^2)  col 16 = -1/(2*theta1^2)
#   rows 0:8, col 17 = sel2 (bit2 of rule index, selects feature-0 membership slot)
#   rows 0:8, col 18 = sel1 (bit1 of rule index, selects feature-1 membership slot)
# ---------------------------------------------------------------------------
def _stage1_kernel(x_ref, p_ref, tnorm_ref):
    x = x_ref[...]                              # (10, TB)  batch on lanes
    p = p_ref[...]                              # (8, 19)   packed parameters

    w1   = p[0:3, 0:10]                         # (3, 10)
    b1   = p[0:3, 10:11]
    gn_g = p[0:3, 11:12]
    gn_b = p[0:3, 12:13]
    m0   = p[0:3, 13:14]
    m1   = p[0:3, 14:15]
    ni0  = p[0:3, 15:16]
    ni1  = p[0:3, 16:17]
    sel2 = p[0:8, 17:18]                        # (8, 1) 0/1 float masks
    sel1 = p[0:8, 18:19]

    # nn.Linear(10, 3):  h = W1 @ x + b1  -> (3, TB).
    h = jnp.dot(w1, x, preferred_element_type=jnp.float32) + b1

    # nn.GroupNorm(1, 3): per-sample (per-lane) normalization over the 3
    # features.  Explicit row adds keep this on the VALU (no sublane reduce).
    h0, h1, h2 = h[0:1, :], h[1:2, :], h[2:3, :]
    mu = (h0 + h1 + h2) * (1.0 / 3.0)
    d0, d1, d2 = h0 - mu, h1 - mu, h2 - mu
    var = (d0 * d0 + d1 * d1 + d2 * d2) * (1.0 / 3.0)
    inv = jax.lax.rsqrt(var + 1e-5)
    h = (h - mu) * inv * gn_g + gn_b            # (3, TB)

    # Gaussian fuzzy memberships (both memory slots); the original
    # sqrt -> clamp -> 2*arcsin -> RY prob round trip is exactly
    # p = min(f + 1e-16, 0.99999^2).
    e0 = h - m0
    e1 = h - m1
    p0 = jnp.minimum(jnp.exp(e0 * e0 * ni0) + 1e-16, _P_CLAMP)   # (3, TB)
    p1 = jnp.minimum(jnp.exp(e1 * e1 * ni1) + 1e-16, _P_CLAMP)

    # t-norm circuit expectation <Z_q3> = 1 - 2*p(q0)*p(q1) for the 8 rules.
    # Rule k (sublane k) selects membership slots via precomputed 0/1 masks:
    # feature 0 <- bit2(k) (MSB), feature 1 <- bit1(k).
    pa = p0[0:1, :] + sel2 * (p1[0:1, :] - p0[0:1, :])           # (8, TB)
    pb = p0[1:2, :] + sel1 * (p1[1:2, :] - p0[1:2, :])           # (8, TB)
    tnorm_ref[...] = 1.0 - 2.0 * pa * pb


# ---------------------------------------------------------------------------
# Stage 2 kernel: BatchNorm1d (full-batch training stats, computed in-kernel
# from the resident full t-norm tensor) + compression Linear + defuzz circuit
# + folded Z-expectation/softmax_linear.
#
# slab2 (26, 23) layout:
#   rows  0:8 , cols 0:8  = U.real
#   rows  8:16, cols 0:8  = U.imag
#   rows 16:26, cols 0:8  = Ws @ zmat^T        col 8 = softmax_linear bias
#   rows  0:3 , cols 9:17 = Wc (compression)   col 17 = bc
#   rows  0:8 , col 18 = BN gamma   col 19 = BN beta
#   rows  0:8 , col 20 = s0  col 21 = s1  col 22 = s2   (basis-state bit masks)
# ---------------------------------------------------------------------------
def _stage2_kernel(t_ref, tfull_ref, p_ref, out_ref, *, inv_b):
    t  = t_ref[...]                             # (8, TB)  this tile, batch on lanes
    tf = tfull_ref[...]                         # (8, B)   full t-norm (for BN stats)
    p  = p_ref[...]                             # (26, 23)

    uri = p[0:16, 0:8]                          # (16, 8)  [U.real ; U.imag]
    mw  = p[16:26, 0:8]                         # (10, 8)  Ws @ zmat^T
    bs  = p[16:26, 8:9]                         # (10, 1)
    wc  = p[0:3, 9:17]                          # (3, 8)
    bc  = p[0:3, 17:18]                         # (3, 1)
    bng = p[0:8, 18:19]                         # (8, 1)
    bnb = p[0:8, 19:20]                         # (8, 1)
    s0  = p[0:8, 20:21]                         # (8, 1) 0/1 basis-state bit masks
    s1  = p[0:8, 21:22]
    s2  = p[0:8, 22:23]

    # BatchNorm1d, training mode: exact FULL-batch statistics (biased variance),
    # identical regardless of the batch tiling.
    ssum = jnp.sum(tf, axis=1, keepdims=True)            # (8, 1)
    ssq  = jnp.sum(tf * tf, axis=1, keepdims=True)       # (8, 1)
    mu   = ssum * inv_b
    var  = ssq * inv_b - mu * mu
    sg   = bng * jax.lax.rsqrt(var + 1e-5)
    tbn  = (t - mu) * sg + bnb                            # (8, TB)

    # nn.Linear(8, 3) compression.
    comp = jnp.dot(wc, tbn, preferred_element_type=jnp.float32) + bc    # (3, TB)

    # defuzz circuit: product RY state over the 8 basis states.
    half = 0.5 * comp
    ch = jnp.cos(half)                          # (3, TB)
    sh = jnp.sin(half)
    a0 = ch[0:1, :] + s0 * (sh[0:1, :] - ch[0:1, :])
    a1 = ch[1:2, :] + s1 * (sh[1:2, :] - ch[1:2, :])
    a2 = ch[2:3, :] + s2 * (sh[2:3, :] - ch[2:3, :])
    svec = a0 * a1 * a2                         # (8, TB)  real product state

    # Fixed unitary: real and imaginary parts fused into one (16,8) matmul.
    psi = jnp.dot(uri, svec, preferred_element_type=jnp.float32)        # (16, TB)
    pr = psi[0:8, :]
    pi = psi[8:16, :]
    probs = pr * pr + pi * pi                   # (8, TB)  |psi|^2

    # <Z_q> expectations and nn.Linear(3, 10) folded into one (10,8) matmul.
    out_ref[...] = jnp.dot(mw, probs, preferred_element_type=jnp.float32) + bs


# ---------------------------------------------------------------------------
# Wrapper
# ---------------------------------------------------------------------------
@functools.lru_cache(maxsize=1)
def _n_tensorcores():
    try:
        kind = jax.devices()[0].device_kind.lower()
    except Exception:
        return 1
    return 2 if "v7" in kind else 1             # v7x: 2 TensorCores per chip


def _pick_batch_tile(batch, requested=None):
    """Legal lane tile: either == batch, or a multiple of 128 (<= batch)."""
    if requested is not None:
        tb = min(int(requested), batch)
        if tb == batch:
            return tb
        tb = (tb // 128) * 128
        return tb if tb >= 128 else batch
    if batch > _MAX_TB:
        return _MAX_TB
    if _n_tensorcores() >= 2 and batch >= 256:
        # keep >= 2 grid steps so the "parallel" batch axis feeds both cores
        tb = ((-(-batch // 2)) + 127) // 128 * 128
        if tb < batch:
            return tb
    return batch


def _forward_fb(xT, params, tb):
    """Core forward in (feature, batch) layout: xT (10, B) -> (10, B)."""
    B = xT.shape[1]
    grid = (pl.cdiv(B, tb),)
    cparams = pltpu.CompilerParams(dimension_semantics=("parallel",))

    # ---- Stage 1: everything up to the t-norm circuit output (8, B) ----------
    tnorm = pl.pallas_call(
        _stage1_kernel,
        out_shape=jax.ShapeDtypeStruct((N_RULES, B), jnp.float32),
        grid=grid,
        in_specs=[
            pl.BlockSpec((N_IN, tb), lambda i: (0, i)),
            pl.BlockSpec(params["slab1"].shape, lambda i: (0, 0)),   # resident
        ],
        out_specs=pl.BlockSpec((N_RULES, tb), lambda i: (0, i)),
        compiler_params=cparams,
    )(xT, params["slab1"])

    # ---- Stage 2: BN (full-batch stats, in-kernel) + compression + defuzz +
    #      folded output linear.  The full (8, B) t-norm is tiny (32*B bytes),
    #      so it is passed a second time as a VMEM-resident input (constant
    #      index_map) purely for the exact BatchNorm statistics.
    outT = pl.pallas_call(
        functools.partial(_stage2_kernel, inv_b=1.0 / float(B)),
        out_shape=jax.ShapeDtypeStruct((N_OUT, B), jnp.float32),
        grid=grid,
        in_specs=[
            pl.BlockSpec((N_RULES, tb), lambda i: (0, i)),
            pl.BlockSpec((N_RULES, B), lambda i: (0, 0)),            # resident
            pl.BlockSpec(params["slab2"].shape, lambda i: (0, 0)),   # resident
        ],
        out_specs=pl.BlockSpec((N_OUT, tb), lambda i: (0, i)),
        compiler_params=cparams,
    )(tnorm, tnorm, params["slab2"])

    return outT


@functools.partial(jax.jit, static_argnames=("batch_tile",))
def qfnn_forward_fb(xT, params, batch_tile=None):
    """(feature, batch) interface: xT (10, B) -> (10, B).  No transposes."""
    xT = xT.astype(jnp.float32)
    tb = _pick_batch_tile(xT.shape[1], batch_tile)
    return _forward_fb(xT, params, tb)


@functools.partial(jax.jit, static_argnames=("batch_tile",))
def qfnn_forward(x, params, batch_tile=None):
    """Original module interface: x (B, 10) -> (B, 10).

    The two transposes here are pure interface plumbing; callers that can
    supply/consume the (feature, batch) layout should use qfnn_forward_fb.
    """
    x = x.astype(jnp.float32)
    tb = _pick_batch_tile(x.shape[0], batch_tile)
    return _forward_fb(x.T, params, tb).T


# ---------------------------------------------------------------------------
# Parameter setup (numpy glue; packs everything into per-stage slabs)
# ---------------------------------------------------------------------------
def init_params(key):
    ks = jax.random.split(key, 6)

    def xavier(k, out_f, in_f):
        lim = float(np.sqrt(6.0 / (in_f + out_f)))
        return np.asarray(jax.random.uniform(k, (out_f, in_f), jnp.float32, -lim, lim),
                          dtype=np.float64)

    W1 = xavier(ks[0], N_QUBITS, N_IN)                       # (3, 10)
    m = np.asarray(jax.random.normal(ks[1], (N_QUBITS, N_FUZZY_MEM), jnp.float32),
                   dtype=np.float64)
    theta = np.asarray(jax.random.normal(ks[2], (N_QUBITS, N_FUZZY_MEM), jnp.float32),
                       dtype=np.float64)
    Wc = xavier(ks[3], DEFUZZ_QUBITS, N_RULES)               # (3, 8)
    Ws = xavier(ks[4], N_OUT, DEFUZZ_QUBITS)                 # (10, 3)
    dw = np.asarray(jax.random.uniform(ks[5], (DEFUZZ_LAYER * 3 * DEFUZZ_QUBITS,),
                                       jnp.float32, -1.0, 1.0), dtype=np.float64)

    rules = np.arange(N_RULES)

    # --- stage-1 slab: Linear(10,3), GroupNorm affine, fuzzy params, rule masks
    slab1 = np.zeros((N_RULES, 19), dtype=np.float32)
    slab1[0:N_QUBITS, 0:10] = W1
    slab1[0:N_QUBITS, 10] = 0.01                             # linear bias
    slab1[0:N_QUBITS, 11] = 1.0                              # GroupNorm gamma
    slab1[0:N_QUBITS, 12] = 0.0                              # GroupNorm beta
    slab1[0:N_QUBITS, 13] = m[:, 0]
    slab1[0:N_QUBITS, 14] = m[:, 1]
    slab1[0:N_QUBITS, 15] = -1.0 / (2.0 * theta[:, 0] ** 2)
    slab1[0:N_QUBITS, 16] = -1.0 / (2.0 * theta[:, 1] ** 2)
    slab1[:, 17] = (rules >> 2) & 1                          # sel2 (feature 0 slot)
    slab1[:, 18] = (rules >> 1) & 1                          # sel1 (feature 1 slot)

    # --- stage-2 slab: defuzz unitary (real|imag), folded Z/softmax_linear,
    #     compression Linear, BatchNorm affine, basis-state bit masks ----------
    U = build_defuzz_unitary(dw)                             # (8, 8) complex

    # Z-expectation signs; qiskit Pauli labels are little-endian, so observable j
    # measures qubit (DEFUZZ_QUBITS - 1 - j).
    zmat = np.zeros((N_RULES, DEFUZZ_QUBITS), dtype=np.float64)
    for k in range(N_RULES):
        for j in range(DEFUZZ_QUBITS):
            zmat[k, j] = 1.0 - 2.0 * ((k >> (DEFUZZ_QUBITS - 1 - j)) & 1)
    M = Ws @ zmat.T                                          # (10, 8) folded

    slab2 = np.zeros((2 * N_RULES + N_OUT, 23), dtype=np.float32)
    slab2[0:N_RULES, 0:N_RULES] = U.real
    slab2[N_RULES:2 * N_RULES, 0:N_RULES] = U.imag
    slab2[2 * N_RULES:, 0:N_RULES] = M
    slab2[2 * N_RULES:, 8] = 0.01                            # softmax_linear bias
    slab2[0:N_QUBITS, 9:17] = Wc                             # compression weight
    slab2[0:N_QUBITS, 17] = 0.01                             # compression bias
    slab2[0:N_RULES, 18] = 1.0                               # BatchNorm gamma
    slab2[0:N_RULES, 19] = 0.0                               # BatchNorm beta
    slab2[0:N_RULES, 20] = rules & 1                         # s0 (qubit-0 bit)
    slab2[0:N_RULES, 21] = (rules >> 1) & 1                  # s1
    slab2[0:N_RULES, 22] = (rules >> 2) & 1                  # s2

    return dict(
        slab1=jnp.asarray(slab1),                            # (8, 19)
        slab2=jnp.asarray(slab2),                            # (26, 23)
    )


if __name__ == "__main__":
    pkey, xkey, x2key = jax.random.split(jax.random.PRNGKey(0), 3)
    params = init_params(pkey)

    B = 256
    x = jax.random.normal(xkey, (B, N_IN), jnp.float32)

    # Default tiling: one big tile on v5e/v6e, two tiles on v7x.
    y = qfnn_forward(x, params)
    jax.block_until_ready(y)
    assert y.shape == (B, N_OUT) and y.dtype == jnp.float32
    assert bool(jnp.all(jnp.isfinite(y)))

    # Tiling must not change the result (BatchNorm statistics stay full-batch:
    # the stage-2 kernel reads the resident full t-norm tensor).
    y_tiled = qfnn_forward(x, params, batch_tile=128)
    jax.block_until_ready(y_tiled)
    assert bool(jnp.allclose(y, y_tiled, atol=1e-5, rtol=1e-5))

    # (feature, batch) fast path agrees with the (batch, feature) interface.
    y_fb = qfnn_forward_fb(x.T, params)
    jax.block_until_ready(y_fb)
    assert y_fb.shape == (N_OUT, B)
    assert bool(jnp.allclose(y, y_fb.T, atol=1e-5, rtol=1e-5))

    # Partial last tile (B not a multiple of the tile) must also be exact.
    B2 = 200
    x2 = jax.random.normal(x2key, (B2, N_IN), jnp.float32)
    y2_full = qfnn_forward(x2, params)                   # single full-batch tile
    y2_tile = qfnn_forward(x2, params, batch_tile=128)   # tiles of 128 + 72
    jax.block_until_ready(y2_tile)
    assert bool(jnp.allclose(y2_full, y2_tile, atol=1e-5, rtol=1e-5))

    print("KERNEL_OK")
</pallas_src>

<mosaic_0001>
module attributes {stable_mosaic.version = 11 : i64} {
  func.func @_stage1_kernel(%arg0: i32, %arg1: memref<10x256xf32, #tpu.memory_space<vmem>>, %arg2: memref<8x19xf32, #tpu.memory_space<vmem>>, %arg3: memref<8x256xf32, #tpu.memory_space<vmem>>) attributes {dimension_semantics = [#tpu.dimension_semantics<parallel>], iteration_bounds = array<i64: 1>, scalar_prefetch = 0 : i64, scratch_operands = 0 : i64, tpu.core_type = #tpu.core_type<tc>, window_params = [{transform_indices = @transform_0, window_bounds = array<i64: 10, 256>}, {pipeline_mode = #tpu.pipeline_mode<synchronous>, transform_indices = @transform_1, window_bounds = array<i64: 8, 19>}, {transform_indices = @transform_2, window_bounds = array<i64: 8, 256>}]} {
    %c0 = arith.constant 0 : index
    %c0_0 = arith.constant 0 : index
    %0 = vector.load %arg1[%c0, %c0_0] : memref<10x256xf32, #tpu.memory_space<vmem>>, vector<10x256xf32>
    %c0_1 = arith.constant 0 : index
    %c0_2 = arith.constant 0 : index
    %1 = vector.load %arg2[%c0_1, %c0_2] : memref<8x19xf32, #tpu.memory_space<vmem>>, vector<8x19xf32>
    %2 = vector.extract_strided_slice %1 {offsets = [0, 0], sizes = [3, 10], strides = [1, 1]} : vector<8x19xf32> to vector<3x10xf32>
    %3 = vector.extract_strided_slice %1 {offsets = [0, 10], sizes = [3, 1], strides = [1, 1]} : vector<8x19xf32> to vector<3x1xf32>
    %4 = vector.extract_strided_slice %1 {offsets = [0, 11], sizes = [3, 1], strides = [1, 1]} : vector<8x19xf32> to vector<3x1xf32>
    %5 = vector.extract_strided_slice %1 {offsets = [0, 12], sizes = [3, 1], strides = [1, 1]} : vector<8x19xf32> to vector<3x1xf32>
    %6 = vector.extract_strided_slice %1 {offsets = [0, 13], sizes = [3, 1], strides = [1, 1]} : vector<8x19xf32> to vector<3x1xf32>
    %7 = vector.extract_strided_slice %1 {offsets = [0, 14], sizes = [3, 1], strides = [1, 1]} : vector<8x19xf32> to vector<3x1xf32>
    %8 = vector.extract_strided_slice %1 {offsets = [0, 15], sizes = [3, 1], strides = [1, 1]} : vector<8x19xf32> to vector<3x1xf32>
    %9 = vector.extract_strided_slice %1 {offsets = [0, 16], sizes = [3, 1], strides = [1, 1]} : vector<8x19xf32> to vector<3x1xf32>
    %10 = vector.extract_strided_slice %1 {offsets = [0, 17], sizes = [8, 1], strides = [1, 1]} : vector<8x19xf32> to vector<8x1xf32>
    %11 = vector.extract_strided_slice %1 {offsets = [0, 18], sizes = [8, 1], strides = [1, 1]} : vector<8x19xf32> to vector<8x1xf32>
    %cst = arith.constant dense<0.000000e+00> : vector<3x256xf32>
    %12 = tpu.matmul %2, %0, %cst {dimension_numbers = #tpu.dot_dimension_numbers<[1], [0], [0], [1], [0, 0, 1, 1], [], []>} : vector<3x10xf32>, vector<10x256xf32>, vector<3x256xf32> -> vector<3x256xf32>
    %13 = vector.broadcast %3 : vector<3x1xf32> to vector<3x256xf32>
    %14 = arith.addf %12, %13 : vector<3x256xf32>
    %15 = vector.extract_strided_slice %14 {offsets = [0, 0], sizes = [1, 256], strides = [1, 1]} : vector<3x256xf32> to vector<1x256xf32>
    %16 = vector.extract_strided_slice %14 {offsets = [1, 0], sizes = [1, 256], strides = [1, 1]} : vector<3x256xf32> to vector<1x256xf32>
    %17 = vector.extract_strided_slice %14 {offsets = [2, 0], sizes = [1, 256], strides = [1, 1]} : vector<3x256xf32> to vector<1x256xf32>
    %18 = arith.addf %15, %16 : vector<1x256xf32>
    %19 = arith.addf %18, %17 : vector<1x256xf32>
    %cst_3 = arith.constant 0.333333343 : f32
    %20 = vector.broadcast %cst_3 : f32 to vector<1x256xf32>
    %21 = arith.mulf %19, %20 : vector<1x256xf32>
    %22 = arith.subf %15, %21 : vector<1x256xf32>
    %23 = arith.subf %16, %21 : vector<1x256xf32>
    %24 = arith.subf %17, %21 : vector<1x256xf32>
    %25 = arith.mulf %22, %22 : vector<1x256xf32>
    %26 = arith.mulf %23, %23 : vector<1x256xf32>
    %27 = arith.addf %25, %26 : vector<1x256xf32>
    %28 = arith.mulf %24, %24 : vector<1x256xf32>
    %29 = arith.addf %27, %28 : vector<1x256xf32>
    %cst_4 = arith.constant 0.333333343 : f32
    %30 = vector.broadcast %cst_4 : f32 to vector<1x256xf32>
    %31 = arith.mulf %29, %30 : vector<1x256xf32>
    %cst_5 = arith.constant 9.99999974E-6 : f32
    %32 = vector.broadcast %cst_5 : f32 to vector<1x256xf32>
    %33 = arith.addf %31, %32 : vector<1x256xf32>
    %34 = math.rsqrt %33 : vector<1x256xf32>
    %35 = vector.broadcast %21 : vector<1x256xf32> to vector<3x256xf32>
    %36 = arith.subf %14, %35 : vector<3x256xf32>
    %37 = vector.broadcast %34 : vector<1x256xf32> to vector<3x256xf32>
    %38 = arith.mulf %36, %37 : vector<3x256xf32>
    %39 = vector.broadcast %4 : vector<3x1xf32> to vector<3x256xf32>
    %40 = arith.mulf %38, %39 : vector<3x256xf32>
    %41 = vector.broadcast %5 : vector<3x1xf32> to vector<3x256xf32>
    %42 = arith.addf %40, %41 : vector<3x256xf32>
    %43 = vector.broadcast %6 : vector<3x1xf32> to vector<3x256xf32>
    %44 = arith.subf %42, %43 : vector<3x256xf32>
    %45 = vector.broadcast %7 : vector<3x1xf32> to vector<3x256xf32>
    %46 = arith.subf %42, %45 : vector<3x256xf32>
    %47 = arith.mulf %44, %44 : vector<3x256xf32>
    %48 = vector.broadcast %8 : vector<3x1xf32> to vector<3x256xf32>
    %49 = arith.mulf %47, %48 : vector<3x256xf32>
    %50 = math.exp %49 : vector<3x256xf32>
    %cst_6 = arith.constant 1.000000e-16 : f32
    %51 = vector.broadcast %cst_6 : f32 to vector<3x256xf32>
    %52 = arith.addf %50, %51 : vector<3x256xf32>
    %cst_7 = arith.constant 0.999979972 : f32
    %53 = vector.broadcast %cst_7 : f32 to vector<3x256xf32>
    %54 = arith.minimumf %52, %53 : vector<3x256xf32>
    %55 = arith.mulf %46, %46 : vector<3x256xf32>
    %56 = vector.broadcast %9 : vector<3x1xf32> to vector<3x256xf32>
    %57 = arith.mulf %55, %56 : vector<3x256xf32>
    %58 = math.exp %57 : vector<3x256xf32>
    %cst_8 = arith.constant 1.000000e-16 : f32
    %59 = vector.broadcast %cst_8 : f32 to vector<3x256xf32>
    %60 = arith.addf %58, %59 : vector<3x256xf32>
    %cst_9 = arith.constant 0.999979972 : f32
    %61 = vector.broadcast %cst_9 : f32 to vector<3x256xf32>
    %62 = arith.minimumf %60, %61 : vector<3x256xf32>
    %63 = vector.extract_strided_slice %54 {offsets = [0, 0], sizes = [1, 256], strides = [1, 1]} : vector<3x256xf32> to vector<1x256xf32>
    %64 = vector.extract_strided_slice %62 {offsets = [0, 0], sizes = [1, 256], strides = [1, 1]} : vector<3x256xf32> to vector<1x256xf32>
    %65 = vector.extract_strided_slice %54 {offsets = [0, 0], sizes = [1, 256], strides = [1, 1]} : vector<3x256xf32> to vector<1x256xf32>
    %66 = arith.subf %64, %65 : vector<1x256xf32>
    %67 = vector.broadcast %10 : vector<8x1xf32> to vector<8x256xf32>
    %68 = vector.broadcast %66 : vector<1x256xf32> to vector<8x256xf32>
    %69 = arith.mulf %67, %68 : vector<8x256xf32>
    %70 = vector.broadcast %63 : vector<1x256xf32> to vector<8x256xf32>
    %71 = arith.addf %70, %69 : vector<8x256xf32>
    %72 = vector.extract_strided_slice %54 {offsets = [1, 0], sizes = [1, 256], strides = [1, 1]} : vector<3x256xf32> to vector<1x256xf32>
    %73 = vector.extract_strided_slice %62 {offsets = [1, 0], sizes = [1, 256], strides = [1, 1]} : vector<3x256xf32> to vector<1x256xf32>
    %74 = vector.extract_strided_slice %54 {offsets = [1, 0], sizes = [1, 256], strides = [1, 1]} : vector<3x256xf32> to vector<1x256xf32>
    %75 = arith.subf %73, %74 : vector<1x256xf32>
    %76 = vector.broadcast %11 : vector<8x1xf32> to vector<8x256xf32>
    %77 = vector.broadcast %75 : vector<1x256xf32> to vector<8x256xf32>
    %78 = arith.mulf %76, %77 : vector<8x256xf32>
    %79 = vector.broadcast %72 : vector<1x256xf32> to vector<8x256xf32>
    %80 = arith.addf %79, %78 : vector<8x256xf32>
    %cst_10 = arith.constant 2.000000e+00 : f32
    %81 = vector.broadcast %cst_10 : f32 to vector<8x256xf32>
    %82 = arith.mulf %81, %71 : vector<8x256xf32>
    %83 = arith.mulf %82, %80 : vector<8x256xf32>
    %cst_11 = arith.constant 1.000000e+00 : f32
    %84 = vector.broadcast %cst_11 : f32 to vector<8x256xf32>
    %85 = arith.subf %84, %83 : vector<8x256xf32>
    %c0_12 = arith.constant 0 : index
    %c0_13 = arith.constant 0 : index
    %86 = vector.load %arg3[%c0_12, %c0_13] : memref<8x256xf32, #tpu.memory_space<vmem>>, vector<8x256xf32>
    tpu.vector_store %arg3[%c0_12, %c0_13], %85 {strides = array<i32>} : memref<8x256xf32, #tpu.memory_space<vmem>>, vector<8x256xf32>,
    return
  }
  func.func @transform_0(%arg0: i32) -> (i32, i32) {
    %c0_i32 = arith.constant 0 : i32
    %c0_i32_0 = arith.constant 0 : i32
    return %c0_i32, %arg0 : i32, i32
  }
  func.func @transform_1(%arg0: i32) -> (i32, i32) {
    %c0_i32 = arith.constant 0 : i32
    %c0_i32_0 = arith.constant 0 : i32
    %c0_i32_1 = arith.constant 0 : i32
    return %c0_i32, %c0_i32_0 : i32, i32
  }
  func.func @transform_2(%arg0: i32) -> (i32, i32) {
    %c0_i32 = arith.constant 0 : i32
    %c0_i32_0 = arith.constant 0 : i32
    return %c0_i32, %arg0 : i32, i32
  }
}

module attributes {stable_mosaic.version = 11 : i64} {
  func.func @_stage2_kernel(%arg0: i32, %arg1: memref<8x256xf32, #tpu.memory_space<vmem>>, %arg2: memref<8x256xf32, #tpu.memory_space<vmem>>, %arg3: memref<26x23xf32, #tpu.memory_space<vmem>>, %arg4: memref<10x256xf32, #tpu.memory_space<vmem>>) attributes {dimension_semantics = [#tpu.dimension_semantics<parallel>], iteration_bounds = array<i64: 1>, scalar_prefetch = 0 : i64, scratch_operands = 0 : i64, tpu.core_type = #tpu.core_type<tc>, window_params = [{transform_indices = @transform_0, window_bounds = array<i64: 8, 256>}, {pipeline_mode = #tpu.pipeline_mode<synchronous>, transform_indices = @transform_1, window_bounds = array<i64: 8, 256>}, {pipeline_mode = #tpu.pipeline_mode<synchronous>, transform_indices = @transform_2, window_bounds = array<i64: 26, 23>}, {transform_indices = @transform_3, window_bounds = array<i64: 10, 256>}]} {
    %c0 = arith.constant 0 : index
    %c0_0 = arith.constant 0 : index
    %0 = vector.load %arg1[%c0, %c0_0] : memref<8x256xf32, #tpu.memory_space<vmem>>, vector<8x256xf32>
    %c0_1 = arith.constant 0 : index
    %c0_2 = arith.constant 0 : index
    %1 = vector.load %arg2[%c0_1, %c0_2] : memref<8x256xf32, #tpu.memory_space<vmem>>, vector<8x256xf32>
    %c0_3 = arith.constant 0 : index
    %c0_4 = arith.constant 0 : index
    %2 = vector.load %arg3[%c0_3, %c0_4] : memref<26x23xf32, #tpu.memory_space<vmem>>, vector<26x23xf32>
    %3 = vector.extract_strided_slice %2 {offsets = [0, 0], sizes = [16, 8], strides = [1, 1]} : vector<26x23xf32> to vector<16x8xf32>
    %4 = vector.extract_strided_slice %2 {offsets = [16, 0], sizes = [10, 8], strides = [1, 1]} : vector<26x23xf32> to vector<10x8xf32>
    %5 = vector.extract_strided_slice %2 {offsets = [16, 8], sizes = [10, 1], strides = [1, 1]} : vector<26x23xf32> to vector<10x1xf32>
    %6 = vector.extract_strided_slice %2 {offsets = [0, 9], sizes = [3, 8], strides = [1, 1]} : vector<26x23xf32> to vector<3x8xf32>
    %7 = vector.extract_strided_slice %2 {offsets = [0, 17], sizes = [3, 1], strides = [1, 1]} : vector<26x23xf32> to vector<3x1xf32>
    %8 = vector.extract_strided_slice %2 {offsets = [0, 18], sizes = [8, 1], strides = [1, 1]} : vector<26x23xf32> to vector<8x1xf32>
    %9 = vector.extract_strided_slice %2 {offsets = [0, 19], sizes = [8, 1], strides = [1, 1]} : vector<26x23xf32> to vector<8x1xf32>
    %10 = vector.extract_strided_slice %2 {offsets = [0, 20], sizes = [8, 1], strides = [1, 1]} : vector<26x23xf32> to vector<8x1xf32>
    %11 = vector.extract_strided_slice %2 {offsets = [0, 21], sizes = [8, 1], strides = [1, 1]} : vector<26x23xf32> to vector<8x1xf32>
    %12 = vector.extract_strided_slice %2 {offsets = [0, 22], sizes = [8, 1], strides = [1, 1]} : vector<26x23xf32> to vector<8x1xf32>
    %cst = arith.constant dense<0.000000e+00> : vector<8xf32>
    %13 = vector.multi_reduction <add>, %1, %cst [1] : vector<8x256xf32> to vector<8xf32>
    %14 = vector.shape_cast %13 : vector<8xf32> to vector<8x1xf32>
    %15 = arith.mulf %1, %1 : vector<8x256xf32>
    %cst_5 = arith.constant dense<0.000000e+00> : vector<8xf32>
    %16 = vector.multi_reduction <add>, %15, %cst_5 [1] : vector<8x256xf32> to vector<8xf32>
    %17 = vector.shape_cast %16 : vector<8xf32> to vector<8x1xf32>
    %cst_6 = arith.constant 3.906250e-03 : f32
    %18 = vector.broadcast %cst_6 : f32 to vector<8x1xf32>
    %19 = arith.mulf %14, %18 : vector<8x1xf32>
    %cst_7 = arith.constant 3.906250e-03 : f32
    %20 = vector.broadcast %cst_7 : f32 to vector<8x1xf32>
    %21 = arith.mulf %17, %20 : vector<8x1xf32>
    %22 = arith.mulf %19, %19 : vector<8x1xf32>
    %23 = arith.subf %21, %22 : vector<8x1xf32>
    %cst_8 = arith.constant 9.99999974E-6 : f32
    %24 = vector.broadcast %cst_8 : f32 to vector<8x1xf32>
    %25 = arith.addf %23, %24 : vector<8x1xf32>
    %26 = math.rsqrt %25 : vector<8x1xf32>
    %27 = arith.mulf %8, %26 : vector<8x1xf32>
    %28 = vector.broadcast %19 : vector<8x1xf32> to vector<8x256xf32>
    %29 = arith.subf %0, %28 : vector<8x256xf32>
    %30 = vector.broadcast %27 : vector<8x1xf32> to vector<8x256xf32>
    %31 = arith.mulf %29, %30 : vector<8x256xf32>
    %32 = vector.broadcast %9 : vector<8x1xf32> to vector<8x256xf32>
    %33 = arith.addf %31, %32 : vector<8x256xf32>
    %cst_9 = arith.constant dense<0.000000e+00> : vector<3x256xf32>
    %34 = tpu.matmul %6, %33, %cst_9 {dimension_numbers = #tpu.dot_dimension_numbers<[1], [0], [0], [1], [0, 0, 1, 1], [], []>} : vector<3x8xf32>, vector<8x256xf32>, vector<3x256xf32> -> vector<3x256xf32>
    %35 = vector.broadcast %7 : vector<3x1xf32> to vector<3x256xf32>
    %36 = arith.addf %34, %35 : vector<3x256xf32>
    %cst_10 = arith.constant 5.000000e-01 : f32
    %37 = vector.broadcast %cst_10 : f32 to vector<3x256xf32>
    %38 = arith.mulf %37, %36 : vector<3x256xf32>
    %39 = math.cos %38 : vector<3x256xf32>
    %40 = math.sin %38 : vector<3x256xf32>
    %41 = vector.extract_strided_slice %39 {offsets = [0, 0], sizes = [1, 256], strides = [1, 1]} : vector<3x256xf32> to vector<1x256xf32>
    %42 = vector.extract_strided_slice %40 {offsets = [0, 0], sizes = [1, 256], strides = [1, 1]} : vector<3x256xf32> to vector<1x256xf32>
    %43 = vector.extract_strided_slice %39 {offsets = [0, 0], sizes = [1, 256], strides = [1, 1]} : vector<3x256xf32> to vector<1x256xf32>
    %44 = arith.subf %42, %43 : vector<1x256xf32>
    %45 = vector.broadcast %10 : vector<8x1xf32> to vector<8x256xf32>
    %46 = vector.broadcast %44 : vector<1x256xf32> to vector<8x256xf32>
    %47 = arith.mulf %45, %46 : vector<8x256xf32>
    %48 = vector.broadcast %41 : vector<1x256xf32> to vector<8x256xf32>
    %49 = arith.addf %48, %47 : vector<8x256xf32>
    %50 = vector.extract_strided_slice %39 {offsets = [1, 0], sizes = [1, 256], strides = [1, 1]} : vector<3x256xf32> to vector<1x256xf32>
    %51 = vector.extract_strided_slice %40 {offsets = [1, 0], sizes = [1, 256], strides = [1, 1]} : vector<3x256xf32> to vector<1x256xf32>
    %52 = vector.extract_strided_slice %39 {offsets = [1, 0], sizes = [1, 256], strides = [1, 1]} : vector<3x256xf32> to vector<1x256xf32>
    %53 = arith.subf %51, %52 : vector<1x256xf32>
    %54 = vector.broadcast %11 : vector<8x1xf32> to vector<8x256xf32>
    %55 = vector.broadcast %53 : vector<1x256xf32> to vector<8x256xf32>
    %56 = arith.mulf %54, %55 : vector<8x256xf32>
    %57 = vector.broadcast %50 : vector<1x256xf32> to vector<8x256xf32>
    %58 = arith.addf %57, %56 : vector<8x256xf32>
    %59 = vector.extract_strided_slice %39 {offsets = [2, 0], sizes = [1, 256], strides = [1, 1]} : vector<3x256xf32> to vector<1x256xf32>
    %60 = vector.extract_strided_slice %40 {offsets = [2, 0], sizes = [1, 256], strides = [1, 1]} : vector<3x256xf32> to vector<1x256xf32>
    %61 = vector.extract_strided_slice %39 {offsets = [2, 0], sizes = [1, 256], strides = [1, 1]} : vector<3x256xf32> to vector<1x256xf32>
    %62 = arith.subf %60, %61 : vector<1x256xf32>
    %63 = vector.broadcast %12 : vector<8x1xf32> to vector<8x256xf32>
    %64 = vector.broadcast %62 : vector<1x256xf32> to vector<8x256xf32>
    %65 = arith.mulf %63, %64 : vector<8x256xf32>
    %66 = vector.broadcast %59 : vector<1x256xf32> to vector<8x256xf32>
    %67 = arith.addf %66, %65 : vector<8x256xf32>
    %68 = arith.mulf %49, %58 : vector<8x256xf32>
    %69 = arith.mulf %68, %67 : vector<8x256xf32>
    %cst_11 = arith.constant dense<0.000000e+00> : vector<16x256xf32>
    %70 = tpu.matmul %3, %69, %cst_11 {dimension_numbers = #tpu.dot_dimension_numbers<[1], [0], [0], [1], [0, 0, 1, 1], [], []>} : vector<16x8xf32>, vector<8x256xf32>, vector<16x256xf32> -> vector<16x256xf32>
    %71 = vector.extract_strided_slice %70 {offsets = [0, 0], sizes = [8, 256], strides = [1, 1]} : vector<16x256xf32> to vector<8x256xf32>
    %72 = vector.extract_strided_slice %70 {offsets = [8, 0], sizes = [8, 256], strides = [1, 1]} : vector<16x256xf32> to vector<8x256xf32>
    %73 = arith.mulf %71, %71 : vector<8x256xf32>
    %74 = arith.mulf %72, %72 : vector<8x256xf32>
    %75 = arith.addf %73, %74 : vector<8x256xf32>
    %cst_12 = arith.constant dense<0.000000e+00> : vector<10x256xf32>
    %76 = tpu.matmul %4, %75, %cst_12 {dimension_numbers = #tpu.dot_dimension_numbers<[1], [0], [0], [1], [0, 0, 1, 1], [], []>} : vector<10x8xf32>, vector<8x256xf32>, vector<10x256xf32> -> vector<10x256xf32>
    %77 = vector.broadcast %5 : vector<10x1xf32> to vector<10x256xf32>
    %78 = arith.addf %76, %77 : vector<10x256xf32>
    %c0_13 = arith.constant 0 : index
    %c0_14 = arith.constant 0 : index
    %79 = vector.load %arg4[%c0_13, %c0_14] : memref<10x256xf32, #tpu.memory_space<vmem>>, vector<10x256xf32>
    tpu.vector_store %arg4[%c0_13, %c0_14], %78 {strides = array<i32>} : memref<10x256xf32, #tpu.memory_space<vmem>>, vector<10x256xf32>,
    return
  }
  func.func @transform_0(%arg0: i32) -> (i32, i32) {
    %c0_i32 = arith.constant 0 : i32
    %c0_i32_0 = arith.constant 0 : i32
    return %c0_i32, %arg0 : i32, i32
  }
  func.func @transform_1(%arg0: i32) -> (i32, i32) {
    %c0_i32 = arith.constant 0 : i32
    %c0_i32_0 = arith.constant 0 : i32
    %c0_i32_1 = arith.constant 0 : i32
    return %c0_i32, %c0_i32_0 : i32, i32
  }
  func.func @transform_2(%arg0: i32) -> (i32, i32) {
    %c0_i32 = arith.constant 0 : i32
    %c0_i32_0 = arith.constant 0 : i32
    %c0_i32_1 = arith.constant 0 : i32
    return %c0_i32, %c0_i32_0 : i32, i32
  }
  func.func @transform_3(%arg0: i32) -> (i32, i32) {
    %c0_i32 = arith.constant 0 : i32
    %c0_i32_0 = arith.constant 0 : i32
    return %c0_i32, %arg0 : i32, i32
  }
}

</mosaic_0001>

<llo_original>
// kernel: qfnn_forward.2
$region0: #{qfnn_forward.2}
  #allocation0 [shape = 'u32[]', space=smem, size = 0x4, offset = 0x4, fixed_abs, tag = 'smem constant byte address 0x4 - core index']
  #allocation1 [shape = 'u32[144,128]{1,0:T(1,128)}', space=vmem, size = 0x12000, scoped, tag = 'internal scratch']
  %s0 = inlined_call_operand.hbm [shape: f32[10,256], index: 0, kind: input, shape index: {}]
  %s1 = inlined_call_operand.hbm [shape: f32[8,19], index: 1, kind: input, shape index: {}]
  %s2 = inlined_call_operand.vmem [shape: f32[8,256], index: 2, kind: output, shape index: {}]
  %s3 = sld [smem:[#allocation0]]
  $region26: #{qfnn_forward.2} parent=0
    _
  %s5 = ssub.s32 1, %s3
  %s6 = scalar_select 0, %s5, %s3
  $region1: #{qfnn_forward.2} parent=0
    #allocation2 [shape = 'u8[16384]{0}', space=vmem, size = 0x4000, scoped, tag = 'input window, operand 0, single buffered']
    #allocation3 [shape = 's32[1]{0}', space=sflag, size = 0x4, scoped, tag = 'scoped memory for qfnn_forward.2']
    #allocation4 [shape = 'u8[4096]{0}', space=vmem, size = 0x1000, scoped, tag = 'input window, operand 1, single buffered']
    #allocation5 [shape = 's32[1]{0}', space=sflag, size = 0x4, scoped, tag = 'scoped memory for qfnn_forward.2']
    %7 = vsyncpa [#allocation3], 0
    %8 = vsyncpa [#allocation5], 0
    // Predicated region
    $region2: #{qfnn_forward.2} parent=1 // pred_check
      _
    $region3: #{qfnn_forward.2} parent=1 // pred_check_branch
      %10 = sbr.rel (0) target = $region5
    $region4: #{qfnn_forward.2} parent=1 // pred_region
      %s12 = ssub.s32 512, 512
      %13 = vsyncadd [#allocation3], %s12
      %s14 = sshll.u32 [#allocation2], 4
      %s15 = int_to_ptr.vmem [resolvable:$true] %s14
      %20 = dma.hbm_to_vmem [thread:$0]  %s0, 512, %s15, [#allocation3], 256, 256, 16
    $region5: #{qfnn_forward.2} parent=1 // pred_fallthru
      _
    // Predicated region
    $region6: #{qfnn_forward.2} parent=1 // pred_check
      _
    $region7: #{qfnn_forward.2} parent=1 // pred_check_branch
      %22 = sbr.rel (0) target = $region9
    $region8: #{qfnn_forward.2} parent=1 // pred_region
      %s24 = ssub.s32 128, 128
      %25 = vsyncadd [#allocation5], %s24
      %s27 = sshll.u32 [#allocation4], 4
      %s28 = int_to_ptr.vmem [resolvable:$true] %s27
      %30 = dma.hbm_to_vmem [thread:$0]  %s1, 128, %s28, [#allocation5]
    $region9: #{qfnn_forward.2} parent=1 // pred_fallthru
      _
    // Predicated region
    $region10: #{qfnn_forward.2} parent=1 // pred_check
      _
    $region11: #{qfnn_forward.2} parent=1 // pred_check_branch
      %32 = sbr.rel (0) target = $region13
    $region12: #{qfnn_forward.2} parent=1 // pred_region
      %33 = dma.done [#allocation3], 512
    $region13: #{qfnn_forward.2} parent=1 // pred_fallthru
      _
    // Predicated region
    $region14: #{qfnn_forward.2} parent=1 // pred_check
      _
    $region15: #{qfnn_forward.2} parent=1 // pred_check_branch
      %35 = sbr.rel (0) target = $region17
    $region16: #{qfnn_forward.2} parent=1 // pred_region
      %36 = dma.done [#allocation5], 128
    $region17: #{qfnn_forward.2} parent=1 // pred_fallthru
      _
    %v37 = vld [vmem:[#allocation2] sm:$0xff]
    %v38 = vld [vmem:[#allocation2 + $0x8] sm:$0xff]
    %v39 = vld [vmem:[#allocation2 + $0x10] sm:$0x3]
    %v40 = vld [vmem:[#allocation2 + $0x18] sm:$0x3]
    %v41 = vld [vmem:[#allocation4] sm:$0xff]
    %43 = vset.pattern.permute.xlu0 10
    %44 = vperm.xlu0 %43, %v41
    %v45 = vpop.permute.xlu0 %44
    %vm47 = vcmask 80896
    %v48 = vsel %vm47, %v41, 0
    %vm50 = vcmask 1041408
    %v52 = vsel %vm50, %v39, 0
    %v55 = vsel %vm50, %v40, 0
    %57 = vmatprep.subr.mxu0 0.0
    %58 = vmatpush1.msra.mxu0 0.0
    %59 = vmatprep.subr.mxu0 0.0
    %60 = vmatpush1.msra.mxu0 0.0
    %61 = vmatprep.subr.mxu0 0.0
    %62 = vmatpush1.msra.mxu0 0.0
    %63 = vmatprep.subr.mxu0 0.0
    %64 = vmatpush1.msra.mxu0 0.0
    %65 = vmatprep.subr.mxu0 0.0
    %66 = vmatpush1.msra.mxu0 0.0
    %67 = vmatprep.subr.mxu0 0.0
    %68 = vmatpush1.msra.mxu0 0.0
    %69 = vmatprep.subr.mxu0 0.0
    %70 = vmatpush1.msra.mxu0 0.0
    %71 = vmatprep.subr.mxu0 0.0
    %72 = vmatpush1.msra.mxu0 0.0
    %73 = vmatprep.subr.mxu0 0.0
    %74 = vmatpush1.msra.mxu0 0.0
    %75 = vmatprep.subr.mxu0 0.0
    %76 = vmatpush1.msra.mxu0 0.0
    %77 = vmatprep.subr.mxu0 0.0
    %78 = vmatpush1.msra.mxu0 0.0
    %79 = vmatprep.subr.mxu0 0.0
    %80 = vmatpush1.msra.mxu0 0.0
    %81 = vmatprep.subr.mxu0 0.0
    %82 = vmatpush1.msra.mxu0 0.0
    %83 = vmatprep.subr.mxu0 0.0
    %84 = vmatpush1.msra.mxu0 0.0
    %85 = vmatprep.subr.mxu0 %v55
    %86 = vmatpush1.msra.mxu0 %v52
    %87 = vmatprep.subr.mxu0 %v38
    %88 = vmatpush1.msra.mxu0 %v37
    %89 = vmatprep.subr.mxu0 0.0
    %90 = vmatpush2.msra.mxu0 0.0
    %91 = vmatprep.subr.mxu0 0.0
    %92 = vmatpush2.msra.mxu0 0.0
    %93 = vmatprep.subr.mxu0 0.0
    %94 = vmatpush2.msra.mxu0 0.0
    %95 = vmatprep.subr.mxu0 0.0
    %96 = vmatpush2.msra.mxu0 0.0
    %97 = vmatprep.subr.mxu0 0.0
    %98 = vmatpush2.msra.mxu0 0.0
    %99 = vmatprep.subr.mxu0 0.0
    %100 = vmatpush2.msra.mxu0 0.0
    %101 = vmatprep.subr.mxu0 0.0
    %102 = vmatpush2.msra.mxu0 0.0
    %103 = vmatprep.subr.mxu0 0.0
    %104 = vmatpush2.msra.mxu0 0.0
    %105 = vmatprep.subr.mxu0 0.0
    %106 = vmatpush2.msra.mxu0 0.0
    %107 = vmatprep.subr.mxu0 0.0
    %108 = vmatpush2.msra.mxu0 0.0
    %109 = vmatprep.subr.mxu0 0.0
    %110 = vmatpush2.msra.mxu0 0.0
    %111 = vmatprep.subr.mxu0 0.0
    %112 = vmatpush2.msra.mxu0 0.0
    %113 = vmatprep.subr.mxu0 0.0
    %114 = vmatpush2.msra.mxu0 0.0
    %115 = vmatprep.subr.mxu0 0.0
    %116 = vmatpush2.msra.mxu0 0.0
    %117 = vmatprep.subr.mxu0 0.0
    %118 = vmatpush2.msra.mxu0 0.0
    %119 = vmatprep.subr.mxu0 0.0
    %120 = vmatpush2.msra.mxu0 0.0
    %121 = vmatprep.mubr.f32.mxu0 0.0
    %122 = vmatmul.mubr.f32.gmra.mxu0 %v48
    %v123 = vpop.f32.mrf.mxu0
    %v124 = vadd.f32 %v45, %v123
    %v125 = vpop.f32.mrf.mxu0
    %v126 = vadd.f32 %v45, %v125
    %127 = vdwg.mxu0
    %v130 = vrot.slane %v124, 1
    %v131 = vrot.slane %v126, 1
    %v134 = vadd.f32 %v124, %v130
    %v135 = vadd.f32 %v126, %v131
    %v136 = vrot.slane %v124, 2
    %v137 = vrot.slane %v126, 2
    %v140 = vadd.f32 %v134, %v136
    %v141 = vadd.f32 %v135, %v137
    %v142 = vmul.f32 %v140, 0.33333334
    %v143 = vmul.f32 %v141, 0.33333334
    %v144 = vsub.f32 %v124, %v142
    %v145 = vsub.f32 %v126, %v143
    %v148 = vrot.slane %v142, 7
    %v149 = vrot.slane %v143, 7
    %v152 = vsub.f32 %v124, %v148
    %v153 = vsub.f32 %v126, %v149
    %v154 = vrot.slane %v142, 6
    %v155 = vrot.slane %v143, 6
    %v158 = vsub.f32 %v124, %v154
    %v159 = vsub.f32 %v126, %v155
    %v160 = vmul.f32 %v144, %v144
    %v161 = vmul.f32 %v145, %v145
    %v162 = vmul.f32 %v152, %v152
    %v163 = vmul.f32 %v153, %v153
    %v166 = vrot.slane %v162, 1
    %v167 = vrot.slane %v163, 1
    %v170 = vadd.f32 %v160, %v166
    %v171 = vadd.f32 %v161, %v167
    %v172 = vmul.f32 %v158, %v158
    %v173 = vmul.f32 %v159, %v159
    %v176 = vrot.slane %v172, 2
    %v177 = vrot.slane %v173, 2
    %v180 = vadd.f32 %v170, %v176
    %v181 = vadd.f32 %v171, %v177
    %v182 = vmul.f32 %v180, 0.33333334
    %v183 = vmul.f32 %v181, 0.33333334
    %v184 = vadd.f32 %v182, 1e-05
    %v185 = vadd.f32 %v183, 1e-05
    %v186 = vrsqrt.pop %v184
    %v187 = vrsqrt.pop %v185
    %v188 = vlaneseq
    %v189 = vshrl.u32 %v188, 7
    %v190 = vsub.s32 0, %v189
    %v191 = vrot.slane %v142, %v190
    %v192 = vlaneseq
    %v193 = vshrl.u32 %v192, 7
    %v194 = vsub.s32 0, %v193
    %v195 = vrot.slane %v143, %v194
    %v196 = vsub.f32 %v124, %v191
    %v197 = vsub.f32 %v126, %v195
    %v198 = vlaneseq
    %v199 = vshrl.u32 %v198, 7
    %v200 = vsub.s32 0, %v199
    %v201 = vrot.slane %v186, %v200
    %v202 = vlaneseq
    %v203 = vshrl.u32 %v202, 7
    %v204 = vsub.s32 0, %v203
    %v205 = vrot.slane %v187, %v204
    %v206 = vmul.f32 %v196, %v201
    %v207 = vmul.f32 %v197, %v205
    %208 = vset.pattern.permute.xlu0 11
    %209 = vperm.xlu0 %208, %v41
    %v210 = vpop.permute.xlu0 %209
    %v212 = vmul.f32 %v206, %v210
    %v213 = vmul.f32 %v207, %v210
    %214 = vset.pattern.permute.xlu0 12
    %215 = vperm.xlu0 %214, %v41
    %v216 = vpop.permute.xlu0 %215
    %v218 = vadd.f32 %v212, %v216
    %v219 = vadd.f32 %v213, %v216
    %220 = vset.pattern.permute.xlu0 13
    %221 = vperm.xlu0 %220, %v41
    %v222 = vpop.permute.xlu0 %221
    %v224 = vsub.f32 %v218, %v222
    %v225 = vsub.f32 %v219, %v222
    %226 = vset.pattern.permute.xlu0 14
    %227 = vperm.xlu0 %226, %v41
    %v228 = vpop.permute.xlu0 %227
    %v230 = vsub.f32 %v218, %v228
    %v231 = vsub.f32 %v219, %v228
    %v232 = vmul.f32 %v224, %v224
    %v233 = vmul.f32 %v225, %v225
    %234 = vset.pattern.permute.xlu0 15
    %235 = vperm.xlu0 %234, %v41
    %v236 = vpop.permute.xlu0 %235
    %v238 = vmul.f32 %v232, %v236
    %v239 = vmul.f32 %v233, %v236
    %v240 = vmul.f32 %v238, 1.442695
    %v241 = vpow.pop %v240
    %v242 = vmul.f32 %v239, 1.442695
    %v243 = vpow.pop %v242
    %v244 = vadd.f32 %v241, 1e-16
    %v245 = vadd.f32 %v243, 1e-16
    %v246 = vmin.f32 %v244, 0.99998
    %v247 = vmin.f32 %v245, 0.99998
    %v248 = vmul.f32 %v230, %v230
    %v249 = vmul.f32 %v231, %v231
    %250 = vset.pattern.permute.xlu0 16
    %251 = vperm.xlu0 %250, %v41
    %v252 = vpop.permute.xlu0 %251
    %v254 = vmul.f32 %v248, %v252
    %v255 = vmul.f32 %v249, %v252
    %v256 = vmul.f32 %v254, 1.442695
    %v257 = vpow.pop %v256
    %v258 = vmul.f32 %v255, 1.442695
    %v259 = vpow.pop %v258
    %v260 = vadd.f32 %v257, 1e-16
    %v261 = vadd.f32 %v259, 1e-16
    %v262 = vmin.f32 %v260, 0.99998
    %v263 = vmin.f32 %v261, 0.99998
    %v264 = vsub.f32 %v262, %v246
    %v265 = vsub.f32 %v263, %v247
    %266 = vset.pattern.permute.xlu0 17
    %267 = vperm.xlu0 %266, %v41
    %v268 = vpop.permute.xlu0 %267
    %v270 = vlaneseq
    %v271 = vshrl.u32 %v270, 7
    %v272 = vsub.s32 0, %v271
    %v273 = vrot.slane %v264, %v272
    %v274 = vlaneseq
    %v275 = vshrl.u32 %v274, 7
    %v276 = vsub.s32 0, %v275
    %v277 = vrot.slane %v265, %v276
    %v278 = vmul.f32 %v268, %v273
    %v279 = vmul.f32 %v268, %v277
    %v280 = vlaneseq
    %v281 = vshrl.u32 %v280, 7
    %v282 = vsub.s32 0, %v281
    %v283 = vrot.slane %v246, %v282
    %v284 = vlaneseq
    %v285 = vshrl.u32 %v284, 7
    %v286 = vsub.s32 0, %v285
    %v287 = vrot.slane %v247, %v286
    %v288 = vadd.f32 %v283, %v278
    %v289 = vadd.f32 %v287, %v279
    %290 = vset.pattern.permute.xlu0 18
    %291 = vperm.xlu0 %290, %v41
    %v292 = vpop.permute.xlu0 %291
    %v294 = vlaneseq
    %v295 = vshrl.u32 %v294, 7
    %v296 = vsub.s32 1, %v295
    %v297 = vrot.slane %v264, %v296
    %v298 = vlaneseq
    %v299 = vshrl.u32 %v298, 7
    %v300 = vsub.s32 1, %v299
    %v301 = vrot.slane %v265, %v300
    %v302 = vmul.f32 %v292, %v297
    %v303 = vmul.f32 %v292, %v301
    %v304 = vlaneseq
    %v305 = vshrl.u32 %v304, 7
    %v306 = vsub.s32 1, %v305
    %v307 = vrot.slane %v246, %v306
    %v308 = vlaneseq
    %v309 = vshrl.u32 %v308, 7
    %v310 = vsub.s32 1, %v309
    %v311 = vrot.slane %v247, %v310
    %v312 = vadd.f32 %v307, %v302
    %v313 = vadd.f32 %v311, %v303
    %v314 = vmul.f32 %v288, 2.0
    %v315 = vmul.f32 %v289, 2.0
    %v316 = vmul.f32 %v314, %v312
    %v317 = vmul.f32 %v315, %v313
    %v318 = vsub.f32 1.0, %v316
    %v319 = vsub.f32 1.0, %v317
    %320 = vst [vmem:[%s2] sm:$0xff] %v318
    %321 = vst [vmem:[%s2 + $0x8] sm:$0xff] %v319
    // Predicated region
    $region18: #{qfnn_forward.2} parent=1 // pred_check
      _
    $region19: #{qfnn_forward.2} parent=1 // pred_check_branch
      %323 = sbr.rel (0) target = $region21
    $region20: #{qfnn_forward.2} parent=1 // pred_region
      _
    $region21: #{qfnn_forward.2} parent=1 // pred_fallthru
      _
    // Predicated region
    $region22: #{qfnn_forward.2} parent=1 // pred_check
      _
    $region23: #{qfnn_forward.2} parent=1 // pred_check_branch
      %325 = sbr.rel (0) target = $region25
    $region24: #{qfnn_forward.2} parent=1 // pred_region
      _
    $region25: #{qfnn_forward.2} parent=1 // pred_fallthru
      _
    %326 = vsyncpa [#allocation3], 1
    %327 = vsyncpa [#allocation5], 1

// kernel: qfnn_forward.3
$region0: #{qfnn_forward.3}
  #allocation0 [shape = 'u32[]', space=smem, size = 0x4, offset = 0x4, fixed_abs, tag = 'smem constant byte address 0x4 - core index']
  #allocation1 [shape = 'u32[144,128]{1,0:T(1,128)}', space=vmem, size = 0x12000, scoped, tag = 'internal scratch']
  %s0 = inlined_call_operand.vmem [shape: f32[8,256], index: 0, kind: input, shape index: {}, may-alias: {0,1}]
  %s1 = inlined_call_operand.vmem [shape: f32[8,256], index: 1, kind: input, shape index: {}, may-alias: {0,1}]
  %s2 = inlined_call_operand.vmem [shape: f32[26,23], index: 2, kind: input, shape index: {}]
  %s3 = inlined_call_operand.hbm [shape: f32[10,256], index: 3, kind: output, shape index: {}]
  %s4 = sld [smem:[#allocation0]]
  $region22: #{qfnn_forward.3} parent=0
    _
  %s6 = ssub.s32 1, %s4
  %s7 = scalar_select 0, %s6, %s4
  $region1: #{qfnn_forward.3} parent=0
    #allocation2 [shape = 'u8[16384]{0}', space=vmem, size = 0x4000, scoped, tag = 'output window, operand 0, single buffered']
    #allocation3 [shape = 's32[1]{0}', space=sflag, size = 0x4, scoped, tag = 'scoped memory for qfnn_forward.3']
    %8 = vsyncpa [#allocation3], 0
    // Predicated region
    $region2: #{qfnn_forward.3} parent=1 // pred_check
      _
    $region3: #{qfnn_forward.3} parent=1 // pred_check_branch
      %10 = sbr.rel (0) target = $region5
    $region4: #{qfnn_forward.3} parent=1 // pred_region
      _
    $region5: #{qfnn_forward.3} parent=1 // pred_fallthru
      _
    // Predicated region
    $region6: #{qfnn_forward.3} parent=1 // pred_check
      _
    $region7: #{qfnn_forward.3} parent=1 // pred_check_branch
      %12 = sbr.rel (0) target = $region9
    $region8: #{qfnn_forward.3} parent=1 // pred_region
      _
    $region9: #{qfnn_forward.3} parent=1 // pred_fallthru
      _
    // Predicated region
    $region10: #{qfnn_forward.3} parent=1 // pred_check
      _
    $region11: #{qfnn_forward.3} parent=1 // pred_check_branch
      %14 = sbr.rel (0) target = $region13
    $region12: #{qfnn_forward.3} parent=1 // pred_region
      _
    $region13: #{qfnn_forward.3} parent=1 // pred_fallthru
      _
    %v15 = vld [vmem:[%s0] sm:$0xff]
    %v16 = vld [vmem:[%s0 + $0x8] sm:$0xff]
    %v17 = vld [vmem:[%s1] sm:$0xff]
    %v18 = vld [vmem:[%s1 + $0x8] sm:$0xff]
    %v19 = vld [vmem:[%s2] sm:$0xff]
    %v20 = vld [vmem:[%s2 + $0x8] sm:$0xff]
    %v21 = vld [vmem:[%s2 + $0x10] sm:$0xff]
    %v22 = vld [vmem:[%s2 + $0x18] sm:$0x3]
    %v23 = vadd.f32 %v17, %v18
    %24 = vadd.xlane.f32.xlu0 %v23
    %v25 = vpop.xlane.xlu0 %24
    %v26 = vmul.f32 %v17, %v17
    %v27 = vmul.f32 %v18, %v18
    %v28 = vadd.f32 %v26, %v27
    %29 = vadd.xlane.f32.xlu0 %v28
    %v30 = vpop.xlane.xlu0 %29
    %v31 = vmul.f32 %v25, 0.00390625
    %v32 = vmul.f32 %v30, 0.00390625
    %v33 = vmul.f32 %v31, %v31
    %v34 = vsub.f32 %v32, %v33
    %v35 = vadd.f32 %v34, 1e-05
    %v36 = vrsqrt.pop %v35
    %v37 = vmul.f32 %v19, %v36
    %v38 = vsub.f32 %v15, %v31
    %v39 = vsub.f32 %v16, %v31
    %41 = vset.pattern.permute.xlu0 18
    %42 = vperm.xlu0 %41, %v37
    %v43 = vpop.permute.xlu0 %42
    %v45 = vmul.f32 %v38, %v43
    %v46 = vmul.f32 %v39, %v43
    %48 = vset.pattern.permute.xlu0 19
    %49 = vperm.xlu0 %48, %v19
    %v50 = vpop.permute.xlu0 %49
    %v52 = vadd.f32 %v45, %v50
    %v53 = vadd.f32 %v46, %v50
    %54 = vset.pattern.permute.xlu0 17
    %55 = vperm.xlu0 %54, %v19
    %v56 = vpop.permute.xlu0 %55
    %58 = vrot.lane.b32.xlu0 %v19, 119
    %v59 = vpop.permute.xlu0 %58
    %vm60 = vcmask 64512
    %v61 = vsel %vm60, %v59, 0
    %63 = vmatprep.subr.mxu0 0.0
    %64 = vmatpush1.msra.mxu0 0.0
    %65 = vmatprep.subr.mxu0 0.0
    %66 = vmatpush1.msra.mxu0 0.0
    %67 = vmatprep.subr.mxu0 0.0
    %68 = vmatpush1.msra.mxu0 0.0
    %69 = vmatprep.subr.mxu0 0.0
    %70 = vmatpush1.msra.mxu0 0.0
    %71 = vmatprep.subr.mxu0 0.0
    %72 = vmatpush1.msra.mxu0 0.0
    %73 = vmatprep.subr.mxu0 0.0
    %74 = vmatpush1.msra.mxu0 0.0
    %75 = vmatprep.subr.mxu0 0.0
    %76 = vmatpush1.msra.mxu0 0.0
    %77 = vmatprep.subr.mxu0 0.0
    %78 = vmatpush1.msra.mxu0 0.0
    %79 = vmatprep.subr.mxu0 0.0
    %80 = vmatpush1.msra.mxu0 0.0
    %81 = vmatprep.subr.mxu0 0.0
    %82 = vmatpush1.msra.mxu0 0.0
    %83 = vmatprep.subr.mxu0 0.0
    %84 = vmatpush1.msra.mxu0 0.0
    %85 = vmatprep.subr.mxu0 0.0
    %86 = vmatpush1.msra.mxu0 0.0
    %87 = vmatprep.subr.mxu0 0.0
    %88 = vmatpush1.msra.mxu0 0.0
    %89 = vmatprep.subr.mxu0 0.0
    %90 = vmatpush1.msra.mxu0 0.0
    %91 = vmatprep.subr.mxu0 0.0
    %92 = vmatpush1.msra.mxu0 0.0
    %93 = vmatprep.subr.mxu0 %v53
    %94 = vmatpush1.msra.mxu0 %v52
    %95 = vmatprep.subr.mxu0 0.0
    %96 = vmatpush2.msra.mxu0 0.0
    %97 = vmatprep.subr.mxu0 0.0
    %98 = vmatpush2.msra.mxu0 0.0
    %99 = vmatprep.subr.mxu0 0.0
    %100 = vmatpush2.msra.mxu0 0.0
    %101 = vmatprep.subr.mxu0 0.0
    %102 = vmatpush2.msra.mxu0 0.0
    %103 = vmatprep.subr.mxu0 0.0
    %104 = vmatpush2.msra.mxu0 0.0
    %105 = vmatprep.subr.mxu0 0.0
    %106 = vmatpush2.msra.mxu0 0.0
    %107 = vmatprep.subr.mxu0 0.0
    %108 = vmatpush2.msra.mxu0 0.0
    %109 = vmatprep.subr.mxu0 0.0
    %110 = vmatpush2.msra.mxu0 0.0
    %111 = vmatprep.subr.mxu0 0.0
    %112 = vmatpush2.msra.mxu0 0.0
    %113 = vmatprep.subr.mxu0 0.0
    %114 = vmatpush2.msra.mxu0 0.0
    %115 = vmatprep.subr.mxu0 0.0
    %116 = vmatpush2.msra.mxu0 0.0
    %117 = vmatprep.subr.mxu0 0.0
    %118 = vmatpush2.msra.mxu0 0.0
    %119 = vmatprep.subr.mxu0 0.0
    %120 = vmatpush2.msra.mxu0 0.0
    %121 = vmatprep.subr.mxu0 0.0
    %122 = vmatpush2.msra.mxu0 0.0
    %123 = vmatprep.subr.mxu0 0.0
    %124 = vmatpush2.msra.mxu0 0.0
    %125 = vmatprep.subr.mxu0 0.0
    %126 = vmatpush2.msra.mxu0 0.0
    %127 = vmatprep.mubr.f32.mxu0 0.0
    %128 = vmatmul.mubr.f32.gmra.mxu0 %v61
    %v129 = vpop.f32.mrf.mxu0
    %v130 = vadd.f32 %v56, %v129
    %v131 = vpop.f32.mrf.mxu0
    %v132 = vadd.f32 %v56, %v131
    %133 = vdwg.mxu0
    %v134 = vmul.f32 %v130, 0.5
    %v135 = vmul.f32 %v132, 0.5
    %v136 = vand.u32 2147483647, %v134
    %vm137 = vcmp.le.f32.partialorder %v136, 0.7853982
    %vm138 = vcmp.lt.s32.totalorder %v134, 0
    %v139 = vand.u32 %v134, 2139095040
    %v140 = vshrl.u32 %v139, 23
    %v141 = vsub.s32 %v140, 127
    %v142 = vand.u32 2147483647, %v134
    %v143 = vand.u32 %v142, 8388607
    %v144 = vor.u32 %v143, 8388608
    %v145 = vsub.s32 0, %v144
    %v146 = vadd.s32 %v141, 1
    %vm147 = vcmp.gt.s32.totalorder %v146, 0
    %v148 = vsel %vm147, %v146, 0
    %v149 = vshrl.u32 %v148, 5
    %v150 = vand.u32 %v148, 31
    %v151 = vsub.s32 32, %v150
    %v152 = vshrl.u32 683565275, %v151
    %v153 = vshll.u32 683565275, %v150
    %v154 = vshrl.u32 2475754826, %v151
    %v155 = vor.u32 %v153, %v154
    %v156 = vshll.u32 2475754826, %v150
    %v157 = vshrl.u32 2131351028, %v151
    %v158 = vor.u32 %v156, %v157
    %v159 = vshll.u32 2131351028, %v150
    %v160 = vshrl.u32 2102212464, %v151
    %v161 = vor.u32 %v159, %v160
    %v162 = vshll.u32 2102212464, %v150
    %v163 = vshrl.u32 920167782, %v151
    %v164 = vor.u32 %v162, %v163
    %v165 = vshll.u32 920167782, %v150
    %v166 = vshrl.u32 1326507024, %v151
    %v167 = vor.u32 %v165, %v166
    %vm168 = vcmp.lt.s32.totalorder %v149, 1
    %vm169 = vcmp.lt.s32.totalorder %v149, 2
    %vm170 = vcmp.lt.s32.totalorder %v149, 3
    %vm171 = vcmp.lt.s32.totalorder %v149, 4
    %v172 = vsel %vm168, %v152, %v155
    %v173 = vsel %vm171, %v161, 2102212464
    %v174 = vsel %vm170, %v158, %v173
    %v175 = vsel %vm169, %v172, %v174
    %v176 = vsel %vm168, %v155, %v158
    %v177 = vsel %vm171, %v164, 920167782
    %v178 = vsel %vm170, %v161, %v177
    %v179 = vsel %vm169, %v176, %v178
    %v180 = vsel %vm168, %v158, %v161
    %v181 = vsel %vm171, %v167, 1326507024
    %v182 = vsel %vm170, %v164, %v181
    %v183 = vsel %vm169, %v180, %v182
    %v184 = vshll.u32 %v144, 8
    %v185 = vmul.u32.u64.compose %v184, %v183
    %v186 = vextract.low.u32 %v185
    %v187 = vextract.high.u32 %v185
    %v188 = vmul.u32.u64.compose %v184, %v179
    %v189 = vextract.low.u32 %v188
    %v190 = vextract.high.u32 %v188
    %v191 = vmul.u32 %v184, %v175
    %v192 = vadd.s32 %v187, %v189
    %vm193 = vc.u32 %v187, %v189
    %v194 = vadd.s32 %v190, 1
    %v195 = vsel %vm193, %v194, %v190
    %v196 = vadd.s32 %v191, %v195
    %v197 = vadd.s32 %v196, 536870912
    %v198 = vshrl.u32 %v197, 30
    %v199 = vshll.u32 %v198, 30
    %v200 = vsub.s32 %v196, %v199
    %vm201 = vcmp.lt.s32.totalorder %v200, 0
    %v202 = vsub.s32 0, %v200
    %v203 = vsel %vm201, %v202, %v200
    %v204 = vclz %v203
    %v205 = vsub.s32 %v204, 2
    %vm206 = vcmp.gt.s32.totalorder 0, %v205
    %v207 = vsel %vm206, 0, %v205
    %v208 = vsub.s32 32, %v207
    %v209 = vshll.u32 %v200, %v207
    %v210 = vshrl.u32 %v192, %v208
    %v211 = vor.u32 %v209, %v210
    %v212 = vsub.s32 4294967266, %v207
    %v213 = vadd.s32 %v212, 127
    %v214 = vshll.u32 %v213, 23
    %v215 = vor.u32 4788187, %v214
    %v216 = vand.u32 2147483647, %v215
    %v218 = vcvt.s32.f32 %v211
    %v219 = vmul.f32 %v218, %v216
    %v220 = vxor.u32 %v219, 2147483648
    %v221 = vsel %vm138, %v220, %v219
    %v222 = vsub.s32 4, %v198
    %v223 = vsel %vm138, %v222, %v198
    %v224 = vsel %vm137, %v134, %v221
    %v225 = vsel %vm137, 0, %v223
    %v226 = vcosq.f32.pop %v224
    %v227 = vsinq.f32.pop %v224
    %vm228 = vweird.f32 %v134
    %v229 = vand.u32 %v225, 3
    %vm230 = vcmp.lt.s32.totalorder %v229, 2
    %vm231 = vcmp.eq.s32.totalorder %v229, 0
    %v232 = vxor.u32 %v227, 2147483648
    %v233 = vsel %vm231, %v226, %v232
    %vm234 = vcmp.eq.s32.totalorder %v229, 2
    %v235 = vxor.u32 %v226, 2147483648
    %v236 = vsel %vm234, %v235, %v227
    %v237 = vsel %vm230, %v233, %v236
    %v238 = vsel %vm228, nan, %v237
    %v239 = vand.u32 2147483647, %v135
    %vm240 = vcmp.le.f32.partialorder %v239, 0.7853982
    %vm241 = vcmp.lt.s32.totalorder %v135, 0
    %v242 = vand.u32 %v135, 2139095040
    %v243 = vshrl.u32 %v242, 23
    %v244 = vsub.s32 %v243, 127
    %v245 = vand.u32 2147483647, %v135
    %v246 = vand.u32 %v245, 8388607
    %v247 = vor.u32 %v246, 8388608
    %v248 = vsub.s32 0, %v247
    %v249 = vadd.s32 %v244, 1
    %vm250 = vcmp.gt.s32.totalorder %v249, 0
    %v251 = vsel %vm250, %v249, 0
    %v252 = vshrl.u32 %v251, 5
    %v253 = vand.u32 %v251, 31
    %v254 = vsub.s32 32, %v253
    %v255 = vshrl.u32 683565275, %v254
    %v256 = vshll.u32 683565275, %v253
    %v257 = vshrl.u32 2475754826, %v254
    %v258 = vor.u32 %v256, %v257
    %v259 = vshll.u32 2475754826, %v253
    %v260 = vshrl.u32 2131351028, %v254
    %v261 = vor.u32 %v259, %v260
    %v262 = vshll.u32 2131351028, %v253
    %v263 = vshrl.u32 2102212464, %v254
    %v264 = vor.u32 %v262, %v263
    %v265 = vshll.u32 2102212464, %v253
    %v266 = vshrl.u32 920167782, %v254
    %v267 = vor.u32 %v265, %v266
    %v268 = vshll.u32 920167782, %v253
    %v269 = vshrl.u32 1326507024, %v254
    %v270 = vor.u32 %v268, %v269
    %vm271 = vcmp.lt.s32.totalorder %v252, 1
    %vm272 = vcmp.lt.s32.totalorder %v252, 2
    %vm273 = vcmp.lt.s32.totalorder %v252, 3
    %vm274 = vcmp.lt.s32.totalorder %v252, 4
    %v275 = vsel %vm271, %v255, %v258
    %v276 = vsel %vm274, %v264, 2102212464
    %v277 = vsel %vm273, %v261, %v276
    %v278 = vsel %vm272, %v275, %v277
    %v279 = vsel %vm271, %v258, %v261
    %v280 = vsel %vm274, %v267, 920167782
    %v281 = vsel %vm273, %v264, %v280
    %v282 = vsel %vm272, %v279, %v281
    %v283 = vsel %vm271, %v261, %v264
    %v284 = vsel %vm274, %v270, 1326507024
    %v285 = vsel %vm273, %v267, %v284
    %v286 = vsel %vm272, %v283, %v285
    %v287 = vshll.u32 %v247, 8
    %v288 = vmul.u32.u64.compose %v287, %v286
    %v289 = vextract.low.u32 %v288
    %v290 = vextract.high.u32 %v288
    %v291 = vmul.u32.u64.compose %v287, %v282
    %v292 = vextract.low.u32 %v291
    %v293 = vextract.high.u32 %v291
    %v294 = vmul.u32 %v287, %v278
    %v295 = vadd.s32 %v290, %v292
    %vm296 = vc.u32 %v290, %v292
    %v297 = vadd.s32 %v293, 1
    %v298 = vsel %vm296, %v297, %v293
    %v299 = vadd.s32 %v294, %v298
    %v300 = vadd.s32 %v299, 536870912
    %v301 = vshrl.u32 %v300, 30
    %v302 = vshll.u32 %v301, 30
    %v303 = vsub.s32 %v299, %v302
    %vm304 = vcmp.lt.s32.totalorder %v303, 0
    %v305 = vsub.s32 0, %v303
    %v306 = vsel %vm304, %v305, %v303
    %v307 = vclz %v306
    %v308 = vsub.s32 %v307, 2
    %vm309 = vcmp.gt.s32.totalorder 0, %v308
    %v310 = vsel %vm309, 0, %v308
    %v311 = vsub.s32 32, %v310
    %v312 = vshll.u32 %v303, %v310
    %v313 = vshrl.u32 %v295, %v311
    %v314 = vor.u32 %v312, %v313
    %v315 = vsub.s32 4294967266, %v310
    %v316 = vadd.s32 %v315, 127
    %v317 = vshll.u32 %v316, 23
    %v318 = vor.u32 4788187, %v317
    %v319 = vand.u32 2147483647, %v318
    %v321 = vcvt.s32.f32 %v314
    %v322 = vmul.f32 %v321, %v319
    %v323 = vxor.u32 %v322, 2147483648
    %v324 = vsel %vm241, %v323, %v322
    %v325 = vsub.s32 4, %v301
    %v326 = vsel %vm241, %v325, %v301
    %v327 = vsel %vm240, %v135, %v324
    %v328 = vsel %vm240, 0, %v326
    %v329 = vcosq.f32.pop %v327
    %v330 = vsinq.f32.pop %v327
    %vm331 = vweird.f32 %v135
    %v332 = vand.u32 %v328, 3
    %vm333 = vcmp.lt.s32.totalorder %v332, 2
    %vm334 = vcmp.eq.s32.totalorder %v332, 0
    %v335 = vxor.u32 %v330, 2147483648
    %v336 = vsel %vm334, %v329, %v335
    %vm337 = vcmp.eq.s32.totalorder %v332, 2
    %v338 = vxor.u32 %v329, 2147483648
    %v339 = vsel %vm337, %v338, %v330
    %v340 = vsel %vm333, %v336, %v339
    %v341 = vsel %vm331, nan, %v340
    %v342 = vand.u32 2147483647, %v134
    %vm343 = vcmp.le.f32.partialorder %v342, 0.7853982
    %vm344 = vcmp.lt.s32.totalorder %v134, 0
    %v345 = vand.u32 %v134, 2139095040
    %v346 = vshrl.u32 %v345, 23
    %v347 = vsub.s32 %v346, 127
    %v348 = vand.u32 2147483647, %v134
    %v349 = vand.u32 %v348, 8388607
    %v350 = vor.u32 %v349, 8388608
    %v351 = vsub.s32 0, %v350
    %v352 = vadd.s32 %v347, 1
    %vm353 = vcmp.gt.s32.totalorder %v352, 0
    %v354 = vsel %vm353, %v352, 0
    %v355 = vshrl.u32 %v354, 5
    %v356 = vand.u32 %v354, 31
    %v357 = vsub.s32 32, %v356
    %v358 = vshrl.u32 683565275, %v357
    %v359 = vshll.u32 683565275, %v356
    %v360 = vshrl.u32 2475754826, %v357
    %v361 = vor.u32 %v359, %v360
    %v362 = vshll.u32 2475754826, %v356
    %v363 = vshrl.u32 2131351028, %v357
    %v364 = vor.u32 %v362, %v363
    %v365 = vshll.u32 2131351028, %v356
    %v366 = vshrl.u32 2102212464, %v357
    %v367 = vor.u32 %v365, %v366
    %v368 = vshll.u32 2102212464, %v356
    %v369 = vshrl.u32 920167782, %v357
    %v370 = vor.u32 %v368, %v369
    %v371 = vshll.u32 920167782, %v356
    %v372 = vshrl.u32 1326507024, %v357
    %v373 = vor.u32 %v371, %v372
    %vm374 = vcmp.lt.s32.totalorder %v355, 1
    %vm375 = vcmp.lt.s32.totalorder %v355, 2
    %vm376 = vcmp.lt.s32.totalorder %v355, 3
    %vm377 = vcmp.lt.s32.totalorder %v355, 4
    %v378 = vsel %vm374, %v358, %v361
    %v379 = vsel %vm377, %v367, 2102212464
    %v380 = vsel %vm376, %v364, %v379
    %v381 = vsel %vm375, %v378, %v380
    %v382 = vsel %vm374, %v361, %v364
    %v383 = vsel %vm377, %v370, 920167782
    %v384 = vsel %vm376, %v367, %v383
    %v385 = vsel %vm375, %v382, %v384
    %v386 = vsel %vm374, %v364, %v367
    %v387 = vsel %vm377, %v373, 1326507024
    %v388 = vsel %vm376, %v370, %v387
    %v389 = vsel %vm375, %v386, %v388
    %v390 = vshll.u32 %v350, 8
    %v391 = vmul.u32.u64.compose %v390, %v389
    %v392 = vextract.low.u32 %v391
    %v393 = vextract.high.u32 %v391
    %v394 = vmul.u32.u64.compose %v390, %v385
    %v395 = vextract.low.u32 %v394
    %v396 = vextract.high.u32 %v394
    %v397 = vmul.u32 %v390, %v381
    %v398 = vadd.s32 %v393, %v395
    %vm399 = vc.u32 %v393, %v395
    %v400 = vadd.s32 %v396, 1
    %v401 = vsel %vm399, %v400, %v396
    %v402 = vadd.s32 %v397, %v401
    %v403 = vadd.s32 %v402, 536870912
    %v404 = vshrl.u32 %v403, 30
    %v405 = vshll.u32 %v404, 30
    %v406 = vsub.s32 %v402, %v405
    %vm407 = vcmp.lt.s32.totalorder %v406, 0
    %v408 = vsub.s32 0, %v406
    %v409 = vsel %vm407, %v408, %v406
    %v410 = vclz %v409
    %v411 = vsub.s32 %v410, 2
    %vm412 = vcmp.gt.s32.totalorder 0, %v411
    %v413 = vsel %vm412, 0, %v411
    %v414 = vsub.s32 32, %v413
    %v415 = vshll.u32 %v406, %v413
    %v416 = vshrl.u32 %v398, %v414
    %v417 = vor.u32 %v415, %v416
    %v418 = vsub.s32 4294967266, %v413
    %v419 = vadd.s32 %v418, 127
    %v420 = vshll.u32 %v419, 23
    %v421 = vor.u32 4788187, %v420
    %v422 = vand.u32 2147483647, %v421
    %v424 = vcvt.s32.f32 %v417
    %v425 = vmul.f32 %v424, %v422
    %v426 = vxor.u32 %v425, 2147483648
    %v427 = vsel %vm344, %v426, %v425
    %v428 = vsub.s32 4, %v404
    %v429 = vsel %vm344, %v428, %v404
    %v430 = vsel %vm343, %v134, %v427
    %v431 = vsel %vm343, 0, %v429
    %v432 = vcosq.f32.pop %v430
    %v433 = vsinq.f32.pop %v430
    %vm434 = vweird.f32 %v134
    %v435 = vadd.s32 %v431, 3
    %v436 = vand.u32 %v435, 3
    %vm437 = vcmp.lt.s32.totalorder %v436, 2
    %vm438 = vcmp.eq.s32.totalorder %v436, 0
    %v439 = vxor.u32 %v433, 2147483648
    %v440 = vsel %vm438, %v432, %v439
    %vm441 = vcmp.eq.s32.totalorder %v436, 2
    %v442 = vxor.u32 %v432, 2147483648
    %v443 = vsel %vm441, %v442, %v433
    %v444 = vsel %vm437, %v440, %v443
    %v445 = vsel %vm434, nan, %v444
    %v446 = vand.u32 2147483647, %v135
    %vm447 = vcmp.le.f32.partialorder %v446, 0.7853982
    %vm448 = vcmp.lt.s32.totalorder %v135, 0
    %v449 = vand.u32 %v135, 2139095040
    %v450 = vshrl.u32 %v449, 23
    %v451 = vsub.s32 %v450, 127
    %v452 = vand.u32 2147483647, %v135
    %v453 = vand.u32 %v452, 8388607
    %v454 = vor.u32 %v453, 8388608
    %v455 = vsub.s32 0, %v454
    %v456 = vadd.s32 %v451, 1
    %vm457 = vcmp.gt.s32.totalorder %v456, 0
    %v458 = vsel %vm457, %v456, 0
    %v459 = vshrl.u32 %v458, 5
    %v460 = vand.u32 %v458, 31
    %v461 = vsub.s32 32, %v460
    %v462 = vshrl.u32 683565275, %v461
    %v463 = vshll.u32 683565275, %v460
    %v464 = vshrl.u32 2475754826, %v461
    %v465 = vor.u32 %v463, %v464
    %v466 = vshll.u32 2475754826, %v460
    %v467 = vshrl.u32 2131351028, %v461
    %v468 = vor.u32 %v466, %v467
    %v469 = vshll.u32 2131351028, %v460
    %v470 = vshrl.u32 2102212464, %v461
    %v471 = vor.u32 %v469, %v470
    %v472 = vshll.u32 2102212464, %v460
    %v473 = vshrl.u32 920167782, %v461
    %v474 = vor.u32 %v472, %v473
    %v475 = vshll.u32 920167782, %v460
    %v476 = vshrl.u32 1326507024, %v461
    %v477 = vor.u32 %v475, %v476
    %vm478 = vcmp.lt.s32.totalorder %v459, 1
    %vm479 = vcmp.lt.s32.totalorder %v459, 2
    %vm480 = vcmp.lt.s32.totalorder %v459, 3
    %vm481 = vcmp.lt.s32.totalorder %v459, 4
    %v482 = vsel %vm478, %v462, %v465
    %v483 = vsel %vm481, %v471, 2102212464
    %v484 = vsel %vm480, %v468, %v483
    %v485 = vsel %vm479, %v482, %v484
    %v486 = vsel %vm478, %v465, %v468
    %v487 = vsel %vm481, %v474, 920167782
    %v488 = vsel %vm480, %v471, %v487
    %v489 = vsel %vm479, %v486, %v488
    %v490 = vsel %vm478, %v468, %v471
    %v491 = vsel %vm481, %v477, 1326507024
    %v492 = vsel %vm480, %v474, %v491
    %v493 = vsel %vm479, %v490, %v492
    %v494 = vshll.u32 %v454, 8
    %v495 = vmul.u32.u64.compose %v494, %v493
    %v496 = vextract.low.u32 %v495
    %v497 = vextract.high.u32 %v495
    %v498 = vmul.u32.u64.compose %v494, %v489
    %v499 = vextract.low.u32 %v498
    %v500 = vextract.high.u32 %v498
    %v501 = vmul.u32 %v494, %v485
    %v502 = vadd.s32 %v497, %v499
    %vm503 = vc.u32 %v497, %v499
    %v504 = vadd.s32 %v500, 1
    %v505 = vsel %vm503, %v504, %v500
    %v506 = vadd.s32 %v501, %v505
    %v507 = vadd.s32 %v506, 536870912
    %v508 = vshrl.u32 %v507, 30
    %v509 = vshll.u32 %v508, 30
    %v510 = vsub.s32 %v506, %v509
    %vm511 = vcmp.lt.s32.totalorder %v510, 0
    %v512 = vsub.s32 0, %v510
    %v513 = vsel %vm511, %v512, %v510
    %v514 = vclz %v513
    %v515 = vsub.s32 %v514, 2
    %vm516 = vcmp.gt.s32.totalorder 0, %v515
    %v517 = vsel %vm516, 0, %v515
    %v518 = vsub.s32 32, %v517
    %v519 = vshll.u32 %v510, %v517
    %v520 = vshrl.u32 %v502, %v518
    %v521 = vor.u32 %v519, %v520
    %v522 = vsub.s32 4294967266, %v517
    %v523 = vadd.s32 %v522, 127
    %v524 = vshll.u32 %v523, 23
    %v525 = vor.u32 4788187, %v524
    %v526 = vand.u32 2147483647, %v525
    %v528 = vcvt.s32.f32 %v521
    %v529 = vmul.f32 %v528, %v526
    %v530 = vxor.u32 %v529, 2147483648
    %v531 = vsel %vm448, %v530, %v529
    %v532 = vsub.s32 4, %v508
    %v533 = vsel %vm448, %v532, %v508
    %v534 = vsel %vm447, %v135, %v531
    %v535 = vsel %vm447, 0, %v533
    %v536 = vcosq.f32.pop %v534
    %v537 = vsinq.f32.pop %v534
    %vm538 = vweird.f32 %v135
    %v539 = vadd.s32 %v535, 3
    %v540 = vand.u32 %v539, 3
    %vm541 = vcmp.lt.s32.totalorder %v540, 2
    %vm542 = vcmp.eq.s32.totalorder %v540, 0
    %v543 = vxor.u32 %v537, 2147483648
    %v544 = vsel %vm542, %v536, %v543
    %vm545 = vcmp.eq.s32.totalorder %v540, 2
    %v546 = vxor.u32 %v536, 2147483648
    %v547 = vsel %vm545, %v546, %v537
    %v548 = vsel %vm541, %v544, %v547
    %v549 = vsel %vm538, nan, %v548
    %v550 = vsub.f32 %v445, %v238
    %v551 = vsub.f32 %v549, %v341
    %552 = vset.pattern.permute.xlu0 20
    %553 = vperm.xlu0 %552, %v19
    %v554 = vpop.permute.xlu0 %553
    %v556 = vlaneseq
    %v557 = vshrl.u32 %v556, 7
    %v558 = vsub.s32 0, %v557
    %v559 = vrot.slane %v550, %v558
    %v560 = vlaneseq
    %v561 = vshrl.u32 %v560, 7
    %v562 = vsub.s32 0, %v561
    %v563 = vrot.slane %v551, %v562
    %v564 = vmul.f32 %v554, %v559
    %v565 = vmul.f32 %v554, %v563
    %v566 = vlaneseq
    %v567 = vshrl.u32 %v566, 7
    %v568 = vsub.s32 0, %v567
    %v569 = vrot.slane %v238, %v568
    %v570 = vlaneseq
    %v571 = vshrl.u32 %v570, 7
    %v572 = vsub.s32 0, %v571
    %v573 = vrot.slane %v341, %v572
    %v574 = vadd.f32 %v569, %v564
    %v575 = vadd.f32 %v573, %v565
    %576 = vset.pattern.permute.xlu0 21
    %577 = vperm.xlu0 %576, %v19
    %v578 = vpop.permute.xlu0 %577
    %v580 = vlaneseq
    %v581 = vshrl.u32 %v580, 7
    %v582 = vsub.s32 1, %v581
    %v583 = vrot.slane %v550, %v582
    %v584 = vlaneseq
    %v585 = vshrl.u32 %v584, 7
    %v586 = vsub.s32 1, %v585
    %v587 = vrot.slane %v551, %v586
    %v588 = vmul.f32 %v578, %v583
    %v589 = vmul.f32 %v578, %v587
    %v590 = vlaneseq
    %v591 = vshrl.u32 %v590, 7
    %v592 = vsub.s32 1, %v591
    %v593 = vrot.slane %v238, %v592
    %v594 = vlaneseq
    %v595 = vshrl.u32 %v594, 7
    %v596 = vsub.s32 1, %v595
    %v597 = vrot.slane %v341, %v596
    %v598 = vadd.f32 %v593, %v588
    %v599 = vadd.f32 %v597, %v589
    %600 = vset.pattern.permute.xlu0 22
    %601 = vperm.xlu0 %600, %v19
    %v602 = vpop.permute.xlu0 %601
    %v604 = vlaneseq
    %v605 = vshrl.u32 %v604, 7
    %v606 = vsub.s32 2, %v605
    %v607 = vrot.slane %v550, %v606
    %v608 = vlaneseq
    %v609 = vshrl.u32 %v608, 7
    %v610 = vsub.s32 2, %v609
    %v611 = vrot.slane %v551, %v610
    %v612 = vmul.f32 %v602, %v607
    %v613 = vmul.f32 %v602, %v611
    %v614 = vlaneseq
    %v615 = vshrl.u32 %v614, 7
    %v616 = vsub.s32 2, %v615
    %v617 = vrot.slane %v238, %v616
    %v618 = vlaneseq
    %v619 = vshrl.u32 %v618, 7
    %v620 = vsub.s32 2, %v619
    %v621 = vrot.slane %v341, %v620
    %v622 = vadd.f32 %v617, %v612
    %v623 = vadd.f32 %v621, %v613
    %v624 = vmul.f32 %v574, %v598
    %v625 = vmul.f32 %v575, %v599
    %v626 = vmul.f32 %v624, %v622
    %v627 = vmul.f32 %v625, %v623
    %v628 = vsel %vm60, %v19, 0
    %v631 = vsel %vm60, %v20, 0
    %633 = vmatprep.subr.mxu0 0.0
    %634 = vmatpush1.msra.mxu0 0.0
    %635 = vmatprep.subr.mxu0 0.0
    %636 = vmatpush1.msra.mxu0 0.0
    %637 = vmatprep.subr.mxu0 0.0
    %638 = vmatpush1.msra.mxu0 0.0
    %639 = vmatprep.subr.mxu0 0.0
    %640 = vmatpush1.msra.mxu0 0.0
    %641 = vmatprep.subr.mxu0 0.0
    %642 = vmatpush1.msra.mxu0 0.0
    %643 = vmatprep.subr.mxu0 0.0
    %644 = vmatpush1.msra.mxu0 0.0
    %645 = vmatprep.subr.mxu0 0.0
    %646 = vmatpush1.msra.mxu0 0.0
    %647 = vmatprep.subr.mxu0 0.0
    %648 = vmatpush1.msra.mxu0 0.0
    %649 = vmatprep.subr.mxu0 0.0
    %650 = vmatpush1.msra.mxu0 0.0
    %651 = vmatprep.subr.mxu0 0.0
    %652 = vmatpush1.msra.mxu0 0.0
    %653 = vmatprep.subr.mxu0 0.0
    %654 = vmatpush1.msra.mxu0 0.0
    %655 = vmatprep.subr.mxu0 0.0
    %656 = vmatpush1.msra.mxu0 0.0
    %657 = vmatprep.subr.mxu0 0.0
    %658 = vmatpush1.msra.mxu0 0.0
    %659 = vmatprep.subr.mxu0 0.0
    %660 = vmatpush1.msra.mxu0 0.0
    %661 = vmatprep.subr.mxu0 0.0
    %662 = vmatpush1.msra.mxu0 0.0
    %663 = vmatprep.subr.mxu0 %v627
    %664 = vmatpush1.msra.mxu0 %v626
    %665 = vmatprep.subr.mxu0 0.0
    %666 = vmatpush2.msra.mxu0 0.0
    %667 = vmatprep.subr.mxu0 0.0
    %668 = vmatpush2.msra.mxu0 0.0
    %669 = vmatprep.subr.mxu0 0.0
    %670 = vmatpush2.msra.mxu0 0.0
    %671 = vmatprep.subr.mxu0 0.0
    %672 = vmatpush2.msra.mxu0 0.0
    %673 = vmatprep.subr.mxu0 0.0
    %674 = vmatpush2.msra.mxu0 0.0
    %675 = vmatprep.subr.mxu0 0.0
    %676 = vmatpush2.msra.mxu0 0.0
    %677 = vmatprep.subr.mxu0 0.0
    %678 = vmatpush2.msra.mxu0 0.0
    %679 = vmatprep.subr.mxu0 0.0
    %680 = vmatpush2.msra.mxu0 0.0
    %681 = vmatprep.subr.mxu0 0.0
    %682 = vmatpush2.msra.mxu0 0.0
    %683 = vmatprep.subr.mxu0 0.0
    %684 = vmatpush2.msra.mxu0 0.0
    %685 = vmatprep.subr.mxu0 0.0
    %686 = vmatpush2.msra.mxu0 0.0
    %687 = vmatprep.subr.mxu0 0.0
    %688 = vmatpush2.msra.mxu0 0.0
    %689 = vmatprep.subr.mxu0 0.0
    %690 = vmatpush2.msra.mxu0 0.0
    %691 = vmatprep.subr.mxu0 0.0
    %692 = vmatpush2.msra.mxu0 0.0
    %693 = vmatprep.subr.mxu0 0.0
    %694 = vmatpush2.msra.mxu0 0.0
    %695 = vmatprep.subr.mxu0 0.0
    %696 = vmatpush2.msra.mxu0 0.0
    %697 = vmatprep.mubr.f32.mxu0 0.0
    %698 = vmatmul.mubr.f32.gmra.mxu0 %v628
    %v699 = vpop.f32.mrf.mxu0
    %v700 = vadd.f32 0.0, %v699
    %v701 = vpop.f32.mrf.mxu0
    %v702 = vadd.f32 0.0, %v701
    %703 = vmatprep.mubr.f32.mxu0 0.0
    %704 = vmatmul.mubr.f32.gmra.mxu0 %v631
    %v705 = vpop.f32.mrf.mxu0
    %v706 = vadd.f32 0.0, %v705
    %v707 = vpop.f32.mrf.mxu0
    %v708 = vadd.f32 0.0, %v707
    %709 = vdwg.mxu0
    %v710 = vmul.f32 %v700, %v700
    %v711 = vmul.f32 %v702, %v702
    %v712 = vmul.f32 %v706, %v706
    %v713 = vmul.f32 %v708, %v708
    %v714 = vadd.f32 %v710, %v712
    %v715 = vadd.f32 %v711, %v713
    %717 = vset.pattern.permute.xlu0 8
    %718 = vperm.xlu0 %717, %v21
    %v719 = vpop.permute.xlu0 %718
    %722 = vset.pattern.permute.xlu0 8
    %723 = vperm.xlu0 %722, %v22
    %v724 = vpop.permute.xlu0 %723
    %v726 = vsel %vm60, %v21, 0
    %v728 = vsel %vm60, %v22, 0
    %730 = vmatprep.subr.mxu0 0.0
    %731 = vmatpush1.msra.mxu0 0.0
    %732 = vmatprep.subr.mxu0 0.0
    %733 = vmatpush1.msra.mxu0 0.0
    %734 = vmatprep.subr.mxu0 0.0
    %735 = vmatpush1.msra.mxu0 0.0
    %736 = vmatprep.subr.mxu0 0.0
    %737 = vmatpush1.msra.mxu0 0.0
    %738 = vmatprep.subr.mxu0 0.0
    %739 = vmatpush1.msra.mxu0 0.0
    %740 = vmatprep.subr.mxu0 0.0
    %741 = vmatpush1.msra.mxu0 0.0
    %742 = vmatprep.subr.mxu0 0.0
    %743 = vmatpush1.msra.mxu0 0.0
    %744 = vmatprep.subr.mxu0 0.0
    %745 = vmatpush1.msra.mxu0 0.0
    %746 = vmatprep.subr.mxu0 0.0
    %747 = vmatpush1.msra.mxu0 0.0
    %748 = vmatprep.subr.mxu0 0.0
    %749 = vmatpush1.msra.mxu0 0.0
    %750 = vmatprep.subr.mxu0 0.0
    %751 = vmatpush1.msra.mxu0 0.0
    %752 = vmatprep.subr.mxu0 0.0
    %753 = vmatpush1.msra.mxu0 0.0
    %754 = vmatprep.subr.mxu0 0.0
    %755 = vmatpush1.msra.mxu0 0.0
    %756 = vmatprep.subr.mxu0 0.0
    %757 = vmatpush1.msra.mxu0 0.0
    %758 = vmatprep.subr.mxu0 0.0
    %759 = vmatpush1.msra.mxu0 0.0
    %760 = vmatprep.subr.mxu0 %v715
    %761 = vmatpush1.msra.mxu0 %v714
    %762 = vmatprep.subr.mxu0 0.0
    %763 = vmatpush2.msra.mxu0 0.0
    %764 = vmatprep.subr.mxu0 0.0
    %765 = vmatpush2.msra.mxu0 0.0
    %766 = vmatprep.subr.mxu0 0.0
    %767 = vmatpush2.msra.mxu0 0.0
    %768 = vmatprep.subr.mxu0 0.0
    %769 = vmatpush2.msra.mxu0 0.0
    %770 = vmatprep.subr.mxu0 0.0
    %771 = vmatpush2.msra.mxu0 0.0
    %772 = vmatprep.subr.mxu0 0.0
    %773 = vmatpush2.msra.mxu0 0.0
    %774 = vmatprep.subr.mxu0 0.0
    %775 = vmatpush2.msra.mxu0 0.0
    %776 = vmatprep.subr.mxu0 0.0
    %777 = vmatpush2.msra.mxu0 0.0
    %778 = vmatprep.subr.mxu0 0.0
    %779 = vmatpush2.msra.mxu0 0.0
    %780 = vmatprep.subr.mxu0 0.0
    %781 = vmatpush2.msra.mxu0 0.0
    %782 = vmatprep.subr.mxu0 0.0
    %783 = vmatpush2.msra.mxu0 0.0
    %784 = vmatprep.subr.mxu0 0.0
    %785 = vmatpush2.msra.mxu0 0.0
    %786 = vmatprep.subr.mxu0 0.0
    %787 = vmatpush2.msra.mxu0 0.0
    %788 = vmatprep.subr.mxu0 0.0
    %789 = vmatpush2.msra.mxu0 0.0
    %790 = vmatprep.subr.mxu0 0.0
    %791 = vmatpush2.msra.mxu0 0.0
    %792 = vmatprep.subr.mxu0 0.0
    %793 = vmatpush2.msra.mxu0 0.0
    %794 = vmatprep.mubr.f32.mxu0 0.0
    %795 = vmatmul.mubr.f32.gmra.mxu0 %v726
    %v796 = vpop.f32.mrf.mxu0
    %v797 = vadd.f32 %v719, %v796
    %v798 = vpop.f32.mrf.mxu0
    %v799 = vadd.f32 %v719, %v798
    %800 = vmatprep.mubr.f32.mxu0 0.0
    %801 = vmatmul.mubr.f32.gmra.mxu0 %v728
    %v802 = vpop.f32.mrf.mxu0
    %v803 = vadd.f32 %v724, %v802
    %v804 = vpop.f32.mrf.mxu0
    %v805 = vadd.f32 %v724, %v804
    %806 = vdwg.mxu0
    %807 = vst [vmem:[#allocation2] sm:$0xff] %v797
    %808 = vst [vmem:[#allocation2 + $0x8] sm:$0xff] %v799
    %809 = vst [vmem:[#allocation2 + $0x10] sm:$0x3] %v803
    %810 = vst [vmem:[#allocation2 + $0x18] sm:$0x3] %v805
    // Predicated region
    $region14: #{qfnn_forward.3} parent=1 // pred_check
      _
    $region15: #{qfnn_forward.3} parent=1 // pred_check_branch
      %812 = sbr.rel (0) target = $region17
    $region16: #{qfnn_forward.3} parent=1 // pred_region
      %s814 = ssub.s32 512, 512
      %815 = vsyncadd [#allocation3], %s814
      %s816 = sshll.u32 [#allocation2], 4
      %s817 = int_to_ptr.vmem [resolvable:$true] %s816
      %822 = dma.vmem_to_hbm [thread:$0]  %s817, 512, %s3, [#allocation3], 256, 256, 16
    $region17: #{qfnn_forward.3} parent=1 // pred_fallthru
      _
    // Predicated region
    $region18: #{qfnn_forward.3} parent=1 // pred_check
      _
    $region19: #{qfnn_forward.3} parent=1 // pred_check_branch
      %824 = sbr.rel (0) target = $region21
    $region20: #{qfnn_forward.3} parent=1 // pred_region
      %825 = dma.done [#allocation3], 512
    $region21: #{qfnn_forward.3} parent=1 // pred_fallthru
      _
    %826 = vsyncpa [#allocation3], 1

</llo_original>
